<compile_context>
chip_gen: v7x
topology: tpu7x:2x2x1
jax: 0.10.0
libtpu: 0.0.40
codegen_flags: <defaults>
</compile_context>

<pallas_src>
import jax
import jax.numpy as jnp
from jax import lax
from jax.experimental import pallas as pl
from jax.experimental.pallas import tpu as pltpu


# ----------------------------- Pallas kernels ------------------------------

def _conv_matmul_relu_kernel(a_ref, w_ref, b_ref, o_ref):
    """out = relu(a @ w + b); BN already folded into w/b on the host."""
    acc = jnp.dot(a_ref[...], w_ref[...], preferred_element_type=jnp.float32)
    o_ref[...] = jnp.maximum(acc + b_ref[...], 0.0).astype(o_ref.dtype)


def _make_fc_stack_kernel(n_classes):
    """Fused fc1 + ReLU + fc2 + log_softmax. Logit columns >= n_classes are
    zero-padded for lane-dense stores and masked out of the softmax."""
    def kernel(x_ref, w1_ref, b1_ref, w2_ref, b2_ref, o_ref):
        h = jnp.maximum(
            jnp.dot(x_ref[...], w1_ref[...], preferred_element_type=jnp.float32)
            + b1_ref[...], 0.0)
        z = (jnp.dot(h.astype(w2_ref.dtype), w2_ref[...],
                     preferred_element_type=jnp.float32) + b2_ref[...])
        col = lax.broadcasted_iota(jnp.int32, z.shape, 1)
        z = jnp.where(col < n_classes, z, jnp.float32(-1e30))
        m = jnp.max(z, axis=-1, keepdims=True)
        lse = m + jnp.log(jnp.sum(jnp.exp(z - m), axis=-1, keepdims=True))
        o_ref[...] = (z - lse).astype(o_ref.dtype)
    return kernel


# ------------------------------- wrappers -----------------------------------

def _pick_block_m(m, max_block=1024):
    """Largest multiple-of-8 divisor of m (<= max_block); prefer >=2 grid
    steps so v7x can split the parallel axis over its 2 TensorCores.
    Falls back to the full extent m (always a legal block)."""
    divisors = [d for d in range(8, min(m, max_block) + 1, 8) if m % d == 0]
    if not divisors:
        return m
    multi = [d for d in divisors if m // d >= 2]
    return max(multi) if multi else max(divisors)


def conv_matmul_relu(a, w, b, *, mxu_dtype=None):
    """(M, K) @ (K, N) + bias + ReLU, tiled over M.

    Output channels are zero-padded to a multiple of 128 inside the call so
    the out_spec is lane-dense; the result is sliced back to N columns."""
    M, K = a.shape
    Kw, N = w.shape
    assert K == Kw
    n_pad = max(128, ((N + 127) // 128) * 128)
    w_p = jnp.pad(w, ((0, 0), (0, n_pad - N)))
    b_p = jnp.pad(b, (0, n_pad - N)).reshape(1, n_pad)
    if mxu_dtype is not None:
        a = a.astype(mxu_dtype)
        w_p = w_p.astype(mxu_dtype)
    bm = _pick_block_m(M)
    out = pl.pallas_call(
        _conv_matmul_relu_kernel,
        out_shape=jax.ShapeDtypeStruct((M, n_pad), jnp.float32),
        grid=(M // bm,),
        in_specs=[
            pl.BlockSpec((bm, K), lambda i: (i, 0)),
            pl.BlockSpec((K, n_pad), lambda i: (0, 0)),
            pl.BlockSpec((1, n_pad), lambda i: (0, 0)),
        ],
        out_specs=pl.BlockSpec((bm, n_pad), lambda i: (i, 0)),
        compiler_params=pltpu.CompilerParams(dimension_semantics=("parallel",)),
    )(a, w_p, b_p)
    return out[:, :N]


def fc_stack(x, w1, b1, w2, b2, *, mxu_dtype=None):
    """Fused fc1(160->100) + ReLU + fc2(100->10) + log_softmax in one call."""
    M, K1 = x.shape
    H = w1.shape[1]
    N = w2.shape[1]
    n_pad = max(128, ((N + 127) // 128) * 128)
    w2_p = jnp.pad(w2, ((0, 0), (0, n_pad - N)))
    b2_p = jnp.pad(b2, (0, n_pad - N)).reshape(1, n_pad)
    b1_r = b1.reshape(1, H)
    if mxu_dtype is not None:
        x = x.astype(mxu_dtype)
        w1 = w1.astype(mxu_dtype)
        w2_p = w2_p.astype(mxu_dtype)
    bm = _pick_block_m(M)  # batch is tiny -> usually a single full block
    out = pl.pallas_call(
        _make_fc_stack_kernel(N),
        out_shape=jax.ShapeDtypeStruct((M, n_pad), jnp.float32),
        grid=(M // bm,),
        in_specs=[
            pl.BlockSpec((bm, K1), lambda i: (i, 0)),
            pl.BlockSpec((K1, H), lambda i: (0, 0)),
            pl.BlockSpec((1, H), lambda i: (0, 0)),
            pl.BlockSpec((H, n_pad), lambda i: (0, 0)),
            pl.BlockSpec((1, n_pad), lambda i: (0, 0)),
        ],
        out_specs=pl.BlockSpec((bm, n_pad), lambda i: (i, 0)),
        compiler_params=pltpu.CompilerParams(dimension_semantics=("parallel",)),
    )(x, w1, b1_r, w2_p, b2_p)
    return out[:, :N]


# --------------------------------- glue ------------------------------------

def _im2col(x, k):
    # x: (N, H, W, C) -> (N*Ho*Wo, k*k*C); feature order (kh, kw, c)
    n, h, w, c = x.shape
    ho, wo = h - k + 1, w - k + 1
    cols = [x[:, i:i + ho, j:j + wo, :] for i in range(k) for j in range(k)]
    patches = jnp.concatenate(cols, axis=-1)
    return patches.reshape(n * ho * wo, k * k * c), (n, ho, wo)


def _fold_bn_into_matmul(w, b, gamma, beta, mean, var, eps=1e-5):
    """Fold inference-mode BN into matmul weights (K, N) and bias (N,)."""
    scale = gamma / jnp.sqrt(var + eps)
    return w * scale[None, :], b * scale + (beta - mean * scale)


def maxpool_2x2(x):
    # NHWC 2x2 stride-2 pool; plain jnp so XLA fuses it (no strided HBM copies).
    n, h, w, c = x.shape
    return x.reshape(n, h // 2, 2, w // 2, 2, c).max(axis=(2, 4))


def init_params(key):
    ks = jax.random.split(key, 16)

    def nrm(i, shape, s=0.1):
        return s * jax.random.normal(ks[i], shape, jnp.float32)

    return dict(
        conv1_w=nrm(0, (5, 1, 5, 5)), conv1_b=nrm(1, (5,)),
        bn1_g=1.0 + nrm(2, (5,)), bn1_b=nrm(3, (5,)),
        bn1_m=nrm(4, (5,)), bn1_v=jnp.abs(1.0 + nrm(5, (5,))),
        conv2_w=nrm(6, (10, 5, 5, 5)), conv2_b=nrm(7, (10,)),
        bn2_g=1.0 + nrm(8, (10,)), bn2_b=nrm(9, (10,)),
        bn2_m=nrm(10, (10,)), bn2_v=jnp.abs(1.0 + nrm(11, (10,))),
        fc1_w=nrm(12, (100, 160)), fc1_b=nrm(13, (100,)),
        fc2_w=nrm(14, (10, 100)), fc2_b=nrm(15, (10,)),
    )


def torch_model_forward(x_nchw, p, mxu_dtype=None):
    # For v6e / v7x, call with mxu_dtype=jnp.bfloat16 to halve MXU-input HBM
    # traffic (epilogue stays f32). Default f32 matches torch exactly.
    n_batch = x_nchw.shape[0]
    x = jnp.transpose(x_nchw, (0, 2, 3, 1))                     # NCHW -> NHWC

    # conv1 (1->5, k=5) + bn1 + relu : im2col matmul, BN folded into w/b
    a, (n, ho, wo) = _im2col(x, 5)                               # (N*24*24, 25)
    w1 = jnp.transpose(p["conv1_w"], (2, 3, 1, 0)).reshape(25, 5)
    w1f, b1f = _fold_bn_into_matmul(w1, p["conv1_b"], p["bn1_g"], p["bn1_b"],
                                    p["bn1_m"], p["bn1_v"])
    y = conv_matmul_relu(a, w1f, b1f, mxu_dtype=mxu_dtype)
    y = y.reshape(n, ho, wo, 5)                                  # (N,24,24,5)
    y = maxpool_2x2(y)                                           # (N,12,12,5)

    # conv2 (5->10, k=5) + bn2 + relu
    a, (n, ho, wo) = _im2col(y, 5)                               # (N*8*8, 125)
    w2 = jnp.transpose(p["conv2_w"], (2, 3, 1, 0)).reshape(125, 10)
    w2f, b2f = _fold_bn_into_matmul(w2, p["conv2_b"], p["bn2_g"], p["bn2_b"],
                                    p["bn2_m"], p["bn2_v"])
    y = conv_matmul_relu(a, w2f, b2f, mxu_dtype=mxu_dtype)
    y = y.reshape(n, ho, wo, 10)                                 # (N,8,8,10)
    y = maxpool_2x2(y)                                           # (N,4,4,10)

    # flatten in PyTorch (C,H,W) order to match x.view(-1, 4*4*10)
    y = jnp.transpose(y, (0, 3, 1, 2)).reshape(n_batch, 4 * 4 * 10)

    # fused fc1 + relu + fc2 + log_softmax (single pallas_call)
    return fc_stack(y, p["fc1_w"].T, p["fc1_b"], p["fc2_w"].T, p["fc2_b"],
                    mxu_dtype=mxu_dtype)


# ------------------------ pure-JAX reference (NCHW) -------------------------

def reference_forward(x, p):
    def conv(x, w, b):
        y = lax.conv_general_dilated(x, w, (1, 1), "VALID",
                                     dimension_numbers=("NCHW", "OIHW", "NCHW"))
        return y + b[None, :, None, None]

    def bn(x, g, b, m, v, eps=1e-5):
        return ((x - m[None, :, None, None])
                / jnp.sqrt(v[None, :, None, None] + eps)
                * g[None, :, None, None] + b[None, :, None, None])

    def pool(x):
        n, c, h, w = x.shape
        return x.reshape(n, c, h // 2, 2, w // 2, 2).max(axis=(3, 5))

    y = jax.nn.relu(bn(conv(x, p["conv1_w"], p["conv1_b"]),
                       p["bn1_g"], p["bn1_b"], p["bn1_m"], p["bn1_v"]))
    y = pool(y)
    y = jax.nn.relu(bn(conv(y, p["conv2_w"], p["conv2_b"]),
                       p["bn2_g"], p["bn2_b"], p["bn2_m"], p["bn2_v"]))
    y = pool(y)
    y = y.reshape(y.shape[0], -1)
    y = jax.nn.relu(y @ p["fc1_w"].T + p["fc1_b"])
    y = y @ p["fc2_w"].T + p["fc2_b"]
    return jax.nn.log_softmax(y, axis=1)


if __name__ == "__main__":
    key = jax.random.PRNGKey(0)
    pkey, xkey = jax.random.split(key)
    params = init_params(pkey)
    x = jax.random.normal(xkey, (2, 1, 28, 28), jnp.float32)    # MNIST-like NCHW

    out = jax.jit(torch_model_forward)(x, params)
    out = jax.block_until_ready(out)
    assert out.shape == (2, 10)

    ref = reference_forward(x, params)
    err = float(jnp.max(jnp.abs(out - ref)))
    assert jnp.allclose(out, ref, atol=1e-3, rtol=1e-3), err
    print("KERNEL_OK")
</pallas_src>

<mosaic_0001>
module attributes {stable_mosaic.version = 11 : i64} {
  func.func @_conv_matmul_relu_kernel(%arg0: i32, %arg1: memref<576x25xf32, #tpu.memory_space<vmem>>, %arg2: memref<25x128xf32, #tpu.memory_space<vmem>>, %arg3: memref<1x128xf32, #tpu.memory_space<vmem>>, %arg4: memref<576x128xf32, #tpu.memory_space<vmem>>) attributes {dimension_semantics = [#tpu.dimension_semantics<parallel>], iteration_bounds = array<i64: 2>, scalar_prefetch = 0 : i64, scratch_operands = 0 : i64, tpu.core_type = #tpu.core_type<tc>, window_params = [{transform_indices = @transform_0, window_bounds = array<i64: 576, 25>}, {pipeline_mode = #tpu.pipeline_mode<synchronous>, transform_indices = @transform_1, window_bounds = array<i64: 25, 128>}, {pipeline_mode = #tpu.pipeline_mode<synchronous>, transform_indices = @transform_2, window_bounds = array<i64: 1, 128>}, {transform_indices = @transform_3, window_bounds = array<i64: 576, 128>}]} {
    %c0 = arith.constant 0 : index
    %c0_0 = arith.constant 0 : index
    %0 = vector.load %arg1[%c0, %c0_0] : memref<576x25xf32, #tpu.memory_space<vmem>>, vector<576x25xf32>
    %c0_1 = arith.constant 0 : index
    %c0_2 = arith.constant 0 : index
    %1 = vector.load %arg2[%c0_1, %c0_2] : memref<25x128xf32, #tpu.memory_space<vmem>>, vector<25x128xf32>
    %cst = arith.constant dense<0.000000e+00> : vector<576x128xf32>
    %2 = tpu.matmul %0, %1, %cst {dimension_numbers = #tpu.dot_dimension_numbers<[1], [0], [0], [1], [0, 0, 1, 1], [], []>} : vector<576x25xf32>, vector<25x128xf32>, vector<576x128xf32> -> vector<576x128xf32>
    %c0_3 = arith.constant 0 : index
    %c0_4 = arith.constant 0 : index
    %3 = vector.load %arg3[%c0_3, %c0_4] : memref<1x128xf32, #tpu.memory_space<vmem>>, vector<1x128xf32>
    %4 = vector.broadcast %3 : vector<1x128xf32> to vector<576x128xf32>
    %5 = arith.addf %2, %4 : vector<576x128xf32>
    %cst_5 = arith.constant 0.000000e+00 : f32
    %6 = vector.broadcast %cst_5 : f32 to vector<576x128xf32>
    %7 = arith.maximumf %5, %6 : vector<576x128xf32>
    %c0_6 = arith.constant 0 : index
    %c0_7 = arith.constant 0 : index
    %8 = vector.load %arg4[%c0_6, %c0_7] : memref<576x128xf32, #tpu.memory_space<vmem>>, vector<576x128xf32>
    tpu.vector_store %arg4[%c0_6, %c0_7], %7 {strides = array<i32>} : memref<576x128xf32, #tpu.memory_space<vmem>>, vector<576x128xf32>,
    return
  }
  func.func @transform_0(%arg0: i32) -> (i32, i32) {
    %c0_i32 = arith.constant 0 : i32
    %c0_i32_0 = arith.constant 0 : i32
    return %arg0, %c0_i32 : i32, i32
  }
  func.func @transform_1(%arg0: i32) -> (i32, i32) {
    %c0_i32 = arith.constant 0 : i32
    %c0_i32_0 = arith.constant 0 : i32
    %c0_i32_1 = arith.constant 0 : i32
    return %c0_i32, %c0_i32_0 : i32, i32
  }
  func.func @transform_2(%arg0: i32) -> (i32, i32) {
    %c0_i32 = arith.constant 0 : i32
    %c0_i32_0 = arith.constant 0 : i32
    %c0_i32_1 = arith.constant 0 : i32
    return %c0_i32, %c0_i32_0 : i32, i32
  }
  func.func @transform_3(%arg0: i32) -> (i32, i32) {
    %c0_i32 = arith.constant 0 : i32
    %c0_i32_0 = arith.constant 0 : i32
    return %arg0, %c0_i32 : i32, i32
  }
}

module attributes {stable_mosaic.version = 11 : i64} {
  func.func @_conv_matmul_relu_kernel(%arg0: i32, %arg1: memref<64x125xf32, #tpu.memory_space<vmem>>, %arg2: memref<125x128xf32, #tpu.memory_space<vmem>>, %arg3: memref<1x128xf32, #tpu.memory_space<vmem>>, %arg4: memref<64x128xf32, #tpu.memory_space<vmem>>) attributes {dimension_semantics = [#tpu.dimension_semantics<parallel>], iteration_bounds = array<i64: 2>, scalar_prefetch = 0 : i64, scratch_operands = 0 : i64, tpu.core_type = #tpu.core_type<tc>, window_params = [{transform_indices = @transform_0, window_bounds = array<i64: 64, 125>}, {pipeline_mode = #tpu.pipeline_mode<synchronous>, transform_indices = @transform_1, window_bounds = array<i64: 125, 128>}, {pipeline_mode = #tpu.pipeline_mode<synchronous>, transform_indices = @transform_2, window_bounds = array<i64: 1, 128>}, {transform_indices = @transform_3, window_bounds = array<i64: 64, 128>}]} {
    %c0 = arith.constant 0 : index
    %c0_0 = arith.constant 0 : index
    %0 = vector.load %arg1[%c0, %c0_0] : memref<64x125xf32, #tpu.memory_space<vmem>>, vector<64x125xf32>
    %c0_1 = arith.constant 0 : index
    %c0_2 = arith.constant 0 : index
    %1 = vector.load %arg2[%c0_1, %c0_2] : memref<125x128xf32, #tpu.memory_space<vmem>>, vector<125x128xf32>
    %cst = arith.constant dense<0.000000e+00> : vector<64x128xf32>
    %2 = tpu.matmul %0, %1, %cst {dimension_numbers = #tpu.dot_dimension_numbers<[1], [0], [0], [1], [0, 0, 1, 1], [], []>} : vector<64x125xf32>, vector<125x128xf32>, vector<64x128xf32> -> vector<64x128xf32>
    %c0_3 = arith.constant 0 : index
    %c0_4 = arith.constant 0 : index
    %3 = vector.load %arg3[%c0_3, %c0_4] : memref<1x128xf32, #tpu.memory_space<vmem>>, vector<1x128xf32>
    %4 = vector.broadcast %3 : vector<1x128xf32> to vector<64x128xf32>
    %5 = arith.addf %2, %4 : vector<64x128xf32>
    %cst_5 = arith.constant 0.000000e+00 : f32
    %6 = vector.broadcast %cst_5 : f32 to vector<64x128xf32>
    %7 = arith.maximumf %5, %6 : vector<64x128xf32>
    %c0_6 = arith.constant 0 : index
    %c0_7 = arith.constant 0 : index
    %8 = vector.load %arg4[%c0_6, %c0_7] : memref<64x128xf32, #tpu.memory_space<vmem>>, vector<64x128xf32>
    tpu.vector_store %arg4[%c0_6, %c0_7], %7 {strides = array<i32>} : memref<64x128xf32, #tpu.memory_space<vmem>>, vector<64x128xf32>,
    return
  }
  func.func @transform_0(%arg0: i32) -> (i32, i32) {
    %c0_i32 = arith.constant 0 : i32
    %c0_i32_0 = arith.constant 0 : i32
    return %arg0, %c0_i32 : i32, i32
  }
  func.func @transform_1(%arg0: i32) -> (i32, i32) {
    %c0_i32 = arith.constant 0 : i32
    %c0_i32_0 = arith.constant 0 : i32
    %c0_i32_1 = arith.constant 0 : i32
    return %c0_i32, %c0_i32_0 : i32, i32
  }
  func.func @transform_2(%arg0: i32) -> (i32, i32) {
    %c0_i32 = arith.constant 0 : i32
    %c0_i32_0 = arith.constant 0 : i32
    %c0_i32_1 = arith.constant 0 : i32
    return %c0_i32, %c0_i32_0 : i32, i32
  }
  func.func @transform_3(%arg0: i32) -> (i32, i32) {
    %c0_i32 = arith.constant 0 : i32
    %c0_i32_0 = arith.constant 0 : i32
    return %arg0, %c0_i32 : i32, i32
  }
}

module attributes {stable_mosaic.version = 11 : i64} {
  func.func @kernel(%arg0: i32, %arg1: memref<2x160xf32, #tpu.memory_space<vmem>>, %arg2: memref<160x100xf32, #tpu.memory_space<vmem>>, %arg3: memref<1x100xf32, #tpu.memory_space<vmem>>, %arg4: memref<100x128xf32, #tpu.memory_space<vmem>>, %arg5: memref<1x128xf32, #tpu.memory_space<vmem>>, %arg6: memref<2x128xf32, #tpu.memory_space<vmem>>) attributes {dimension_semantics = [#tpu.dimension_semantics<parallel>], iteration_bounds = array<i64: 1>, scalar_prefetch = 0 : i64, scratch_operands = 0 : i64, tpu.core_type = #tpu.core_type<tc>, window_params = [{transform_indices = @transform_0, window_bounds = array<i64: 2, 160>}, {pipeline_mode = #tpu.pipeline_mode<synchronous>, transform_indices = @transform_1, window_bounds = array<i64: 160, 100>}, {pipeline_mode = #tpu.pipeline_mode<synchronous>, transform_indices = @transform_2, window_bounds = array<i64: 1, 100>}, {pipeline_mode = #tpu.pipeline_mode<synchronous>, transform_indices = @transform_3, window_bounds = array<i64: 100, 128>}, {pipeline_mode = #tpu.pipeline_mode<synchronous>, transform_indices = @transform_4, window_bounds = array<i64: 1, 128>}, {transform_indices = @transform_5, window_bounds = array<i64: 2, 128>}]} {
    %c0 = arith.constant 0 : index
    %c0_0 = arith.constant 0 : index
    %0 = vector.load %arg1[%c0, %c0_0] : memref<2x160xf32, #tpu.memory_space<vmem>>, vector<2x160xf32>
    %c0_1 = arith.constant 0 : index
    %c0_2 = arith.constant 0 : index
    %1 = vector.load %arg2[%c0_1, %c0_2] : memref<160x100xf32, #tpu.memory_space<vmem>>, vector<160x100xf32>
    %cst = arith.constant dense<0.000000e+00> : vector<2x100xf32>
    %2 = tpu.matmul %0, %1, %cst {dimension_numbers = #tpu.dot_dimension_numbers<[1], [0], [0], [1], [0, 0, 1, 1], [], []>} : vector<2x160xf32>, vector<160x100xf32>, vector<2x100xf32> -> vector<2x100xf32>
    %c0_3 = arith.constant 0 : index
    %c0_4 = arith.constant 0 : index
    %3 = vector.load %arg3[%c0_3, %c0_4] : memref<1x100xf32, #tpu.memory_space<vmem>>, vector<1x100xf32>
    %4 = vector.broadcast %3 : vector<1x100xf32> to vector<2x100xf32>
    %5 = arith.addf %2, %4 : vector<2x100xf32>
    %cst_5 = arith.constant 0.000000e+00 : f32
    %6 = vector.broadcast %cst_5 : f32 to vector<2x100xf32>
    %7 = arith.maximumf %5, %6 : vector<2x100xf32>
    %c0_6 = arith.constant 0 : index
    %c0_7 = arith.constant 0 : index
    %8 = vector.load %arg4[%c0_6, %c0_7] : memref<100x128xf32, #tpu.memory_space<vmem>>, vector<100x128xf32>
    %cst_8 = arith.constant dense<0.000000e+00> : vector<2x128xf32>
    %9 = tpu.matmul %7, %8, %cst_8 {dimension_numbers = #tpu.dot_dimension_numbers<[1], [0], [0], [1], [0, 0, 1, 1], [], []>} : vector<2x100xf32>, vector<100x128xf32>, vector<2x128xf32> -> vector<2x128xf32>
    %c0_9 = arith.constant 0 : index
    %c0_10 = arith.constant 0 : index
    %10 = vector.load %arg5[%c0_9, %c0_10] : memref<1x128xf32, #tpu.memory_space<vmem>>, vector<1x128xf32>
    %11 = vector.broadcast %10 : vector<1x128xf32> to vector<2x128xf32>
    %12 = arith.addf %9, %11 : vector<2x128xf32>
    %13 = tpu.iota {dimensions = array<i32: 1>} : vector<2x128xi32>
    %c10_i32 = arith.constant 10 : i32
    %14 = vector.broadcast %c10_i32 : i32 to vector<2x128xi32>
    %15 = arith.cmpi slt, %13, %14 : vector<2x128xi32>
    %cst_11 = arith.constant -1.000000e+30 : f32
    %16 = vector.broadcast %cst_11 : f32 to vector<2x128xf32>
    %17 = arith.select %15, %12, %16 : vector<2x128xi1>, vector<2x128xf32>
    %cst_12 = arith.constant dense<0xFF800000> : vector<2xf32>
    %18 = vector.multi_reduction <maximumf>, %17, %cst_12 [1] : vector<2x128xf32> to vector<2xf32>
    %19 = vector.shape_cast %18 : vector<2xf32> to vector<2x1xf32>
    %20 = vector.broadcast %19 : vector<2x1xf32> to vector<2x128xf32>
    %21 = arith.subf %17, %20 : vector<2x128xf32>
    %22 = math.exp %21 : vector<2x128xf32>
    %cst_13 = arith.constant dense<0.000000e+00> : vector<2xf32>
    %23 = vector.multi_reduction <add>, %22, %cst_13 [1] : vector<2x128xf32> to vector<2xf32>
    %24 = vector.shape_cast %23 : vector<2xf32> to vector<2x1xf32>
    %25 = math.log %24 : vector<2x1xf32>
    %26 = arith.addf %19, %25 : vector<2x1xf32>
    %27 = vector.broadcast %26 : vector<2x1xf32> to vector<2x128xf32>
    %28 = arith.subf %17, %27 : vector<2x128xf32>
    %c0_14 = arith.constant 0 : index
    %c0_15 = arith.constant 0 : index
    %29 = vector.load %arg6[%c0_14, %c0_15] : memref<2x128xf32, #tpu.memory_space<vmem>>, vector<2x128xf32>
    tpu.vector_store %arg6[%c0_14, %c0_15], %28 {strides = array<i32>} : memref<2x128xf32, #tpu.memory_space<vmem>>, vector<2x128xf32>,
    return
  }
  func.func @transform_0(%arg0: i32) -> (i32, i32) {
    %c0_i32 = arith.constant 0 : i32
    %c0_i32_0 = arith.constant 0 : i32
    return %arg0, %c0_i32 : i32, i32
  }
  func.func @transform_1(%arg0: i32) -> (i32, i32) {
    %c0_i32 = arith.constant 0 : i32
    %c0_i32_0 = arith.constant 0 : i32
    %c0_i32_1 = arith.constant 0 : i32
    return %c0_i32, %c0_i32_0 : i32, i32
  }
  func.func @transform_2(%arg0: i32) -> (i32, i32) {
    %c0_i32 = arith.constant 0 : i32
    %c0_i32_0 = arith.constant 0 : i32
    %c0_i32_1 = arith.constant 0 : i32
    return %c0_i32, %c0_i32_0 : i32, i32
  }
  func.func @transform_3(%arg0: i32) -> (i32, i32) {
    %c0_i32 = arith.constant 0 : i32
    %c0_i32_0 = arith.constant 0 : i32
    %c0_i32_1 = arith.constant 0 : i32
    return %c0_i32, %c0_i32_0 : i32, i32
  }
  func.func @transform_4(%arg0: i32) -> (i32, i32) {
    %c0_i32 = arith.constant 0 : i32
    %c0_i32_0 = arith.constant 0 : i32
    %c0_i32_1 = arith.constant 0 : i32
    return %c0_i32, %c0_i32_0 : i32, i32
  }
  func.func @transform_5(%arg0: i32) -> (i32, i32) {
    %c0_i32 = arith.constant 0 : i32
    %c0_i32_0 = arith.constant 0 : i32
    return %arg0, %c0_i32 : i32, i32
  }
}

</mosaic_0001>

<llo_original>
// kernel: torch_model_forward.3
$region0: #{torch_model_forward.3}
  #allocation0 [shape = 'u32[]', space=smem, size = 0x4, offset = 0x4, fixed_abs, tag = 'smem constant byte address 0x4 - core index']
  #allocation1 [shape = 'u32[144,128]{1,0:T(1,128)}', space=vmem, size = 0x12000, scoped, tag = 'internal scratch']
  %s0 = inlined_call_operand.vmem [shape: f32[1152,25], index: 0, kind: input, shape index: {}]
  %s1 = inlined_call_operand.vmem [shape: f32[25,128], index: 1, kind: input, shape index: {}]
  %s2 = inlined_call_operand.vmem [shape: f32[1,128], index: 2, kind: input, shape index: {}]
  %s3 = inlined_call_operand.vmem [shape: f32[1152,128], index: 3, kind: output, shape index: {}]
  %s4 = sld [smem:[#allocation0]]
  $region45: #{torch_model_forward.3} parent=0
    _
  %s6 = ssub.s32 1, %s4
  %s7 = scalar_select 0, %s6, %s4
  loop: start=0, step=1, limit=4
  $region2: #{torch_model_forward.3} parent=0 // loop_pre_header
    _
  $region3: #{torch_model_forward.3} parent=0 // loop_header
    %s9 = sphi 0, %s13
    %p10 = scmp.ge.s32.totalorder %s9, 4
    %s19 = sphi 0, %s21
    %s22 = sphi 0, %s19
    %s23 = sphi 0, %s22
    %s39 = sphi 0, %s23
    %s43 = sphi 0, %s43
    %s45 = sphi 0, %s43
    %s46 = sphi 0, %s45
    %s60 = sphi 0, %s46
    %s64 = sphi 0, %s64
    %s66 = sphi 0, %s64
    %s67 = sphi 0, %s66
    %s81 = sphi 0, %s67
    %s87 = sphi 0, %s89
    %s90 = sphi 0, %s87
    %s91 = sphi 0, %s90
    %s107 = sphi 0, %s91
  $region4: #{torch_model_forward.3} parent=0 // loop_header_branch
    %12 = sbr.rel (%p10) target = $region8
  $region5: #{torch_model_forward.3} parent=0 // loop_body
    %s14 = ssub.s32 %s9, 1
    %s15 = ssub.s32 %s9, 2
    %s16 = sadd.s32 %s9, 1
    %s17 = ssub.s32 %s9, %s16
    %p18 = scmp.eq.s32.totalorder %s17, 0
    %s20 = sadd.s32 %s19, 1
    %s21 = scalar_select %p18, %s19, %s20
    %p24 = pneg %p18
    %p25 = scmp.eq.s32.totalorder %s9, 1
    %p26 = por %p24, %p25
    %p27 = scmp.ne.s32.totalorder %s19, %s22
    %p28 = scmp.eq.s32.totalorder %s9, 0
    %p29 = por %p27, %p28
    %p30 = scmp.ne.s32.totalorder %s19, %s22
    %p31 = scmp.eq.s32.totalorder %s14, 1
    %p32 = por %p30, %p31
    %p33 = scmp.ne.s32.totalorder %s22, %s23
    %p34 = scmp.eq.s32.totalorder %s14, 0
    %p35 = por %p33, %p34
    %p36 = scmp.ne.s32.totalorder %s22, %s23
    %p37 = scmp.eq.s32.totalorder %s15, 1
    %p38 = por %p36, %p37
    %p40 = scmp.ne.s32.totalorder %s23, %s39
    %p41 = scmp.eq.s32.totalorder %s15, 0
    %p42 = por %p40, %p41
    %s44 = sadd.s32 %s43, 1
    %p47 = scmp.eq.s32.totalorder %s9, 1
    %p48 = scmp.ne.s32.totalorder %s43, %s45
    %p49 = scmp.eq.s32.totalorder %s9, 0
    %p50 = por %p48, %p49
    %p51 = scmp.ne.s32.totalorder %s43, %s45
    %p52 = scmp.eq.s32.totalorder %s14, 1
    %p53 = por %p51, %p52
    %p54 = scmp.ne.s32.totalorder %s45, %s46
    %p55 = scmp.eq.s32.totalorder %s14, 0
    %p56 = por %p54, %p55
    %p57 = scmp.ne.s32.totalorder %s45, %s46
    %p58 = scmp.eq.s32.totalorder %s15, 1
    %p59 = por %p57, %p58
    %p61 = scmp.ne.s32.totalorder %s46, %s60
    %p62 = scmp.eq.s32.totalorder %s15, 0
    %p63 = por %p61, %p62
    %s65 = sadd.s32 %s64, 1
    %p68 = scmp.eq.s32.totalorder %s9, 1
    %p69 = scmp.ne.s32.totalorder %s64, %s66
    %p70 = scmp.eq.s32.totalorder %s9, 0
    %p71 = por %p69, %p70
    %p72 = scmp.ne.s32.totalorder %s64, %s66
    %p73 = scmp.eq.s32.totalorder %s14, 1
    %p74 = por %p72, %p73
    %p75 = scmp.ne.s32.totalorder %s66, %s67
    %p76 = scmp.eq.s32.totalorder %s14, 0
    %p77 = por %p75, %p76
    %p78 = scmp.ne.s32.totalorder %s66, %s67
    %p79 = scmp.eq.s32.totalorder %s15, 1
    %p80 = por %p78, %p79
    %p82 = scmp.ne.s32.totalorder %s67, %s81
    %p83 = scmp.eq.s32.totalorder %s15, 0
    %p84 = por %p82, %p83
    %s85 = ssub.s32 %s9, %s16
    %p86 = scmp.eq.s32.totalorder %s85, 0
    %s88 = sadd.s32 %s87, 1
    %s89 = scalar_select %p86, %s87, %s88
    %p92 = pneg %p86
    %p93 = scmp.eq.s32.totalorder %s9, 1
    %p94 = por %p92, %p93
    %p95 = scmp.ne.s32.totalorder %s87, %s90
    %p96 = scmp.eq.s32.totalorder %s9, 0
    %p97 = por %p95, %p96
    %p98 = scmp.ne.s32.totalorder %s87, %s90
    %p99 = scmp.eq.s32.totalorder %s14, 1
    %p100 = por %p98, %p99
    %p101 = scmp.ne.s32.totalorder %s90, %s91
    %p102 = scmp.eq.s32.totalorder %s14, 0
    %p103 = por %p101, %p102
    %p104 = scmp.ne.s32.totalorder %s90, %s91
    %p105 = scmp.eq.s32.totalorder %s15, 1
    %p106 = por %p104, %p105
    %p108 = scmp.ne.s32.totalorder %s91, %s107
    %p109 = scmp.eq.s32.totalorder %s15, 0
    %p110 = por %p108, %p109
    %p111 = scmp.le.s32.totalorder 1, %s9
    %p112 = scmp.lt.s32.totalorder %s9, 3
    %p113 = pnand %p111, %p112
    %p114 = pneg %p113
    // Predicated region
    $region9: #{torch_model_forward.3} parent=5 // pred_check
      _
    $region10: #{torch_model_forward.3} parent=5 // pred_check_branch
      %116 = sbr.rel (%p113) target = $region12
    $region11: #{torch_model_forward.3} parent=5 // pred_region
      %s117 = ssub.s32 %s9, 1
      // Predicated region
      $region13: #{torch_model_forward.3} parent=11 // pred_check
        %p118 = pneg %p56
      $region14: #{torch_model_forward.3} parent=11 // pred_check_branch
        %120 = sbr.rel (%p118) target = $region16
      $region15: #{torch_model_forward.3} parent=11 // pred_region
        _
      $region16: #{torch_model_forward.3} parent=11 // pred_fallthru
        _
      // Predicated region
      $region17: #{torch_model_forward.3} parent=11 // pred_check
        %p121 = pneg %p77
      $region18: #{torch_model_forward.3} parent=11 // pred_check_branch
        %123 = sbr.rel (%p121) target = $region20
      $region19: #{torch_model_forward.3} parent=11 // pred_region
        _
      $region20: #{torch_model_forward.3} parent=11 // pred_fallthru
        _
    $region12: #{torch_model_forward.3} parent=5 // pred_fallthru
      _
    %p124 = scmp.lt.s32.totalorder %s9, 2
    // Predicated region
    $region21: #{torch_model_forward.3} parent=5 // pred_check
      %p125 = pneg %p124
    $region22: #{torch_model_forward.3} parent=5 // pred_check_branch
      %127 = sbr.rel (%p125) target = $region24
    $region23: #{torch_model_forward.3} parent=5 // pred_region
      // Predicated region
      $region25: #{torch_model_forward.3} parent=23 // pred_check
        %p128 = pneg %p29
      $region26: #{torch_model_forward.3} parent=23 // pred_check_branch
        %130 = sbr.rel (%p128) target = $region28
      $region27: #{torch_model_forward.3} parent=23 // pred_region
        %s131 = smul.u32 72, %s9
        %p132 = scmp.lt.s32.totalorder %s131, 143
        %s133 = scalar_select %p132, %s131, 143
        %s134 = smul.addr %s133, 8
        %s135 = scalar_lea.vmem %s0, %s134
        %s136 = smul.u32 72, %s9
      $region28: #{torch_model_forward.3} parent=23 // pred_fallthru
        _
    $region24: #{torch_model_forward.3} parent=5 // pred_fallthru
      _
    %p137 = scmp.le.s32.totalorder 1, %s9
    %p138 = scmp.lt.s32.totalorder %s9, 3
    %p139 = pnand %p137, %p138
    %p140 = pneg %p139
    // Predicated region
    $region29: #{torch_model_forward.3} parent=5 // pred_check
      _
    $region30: #{torch_model_forward.3} parent=5 // pred_check_branch
      %142 = sbr.rel (%p139) target = $region32
    $region31: #{torch_model_forward.3} parent=5 // pred_region
      %s143 = ssub.s32 %s9, 1
      %s144 = smul.u32 72, %s14
      %p145 = scmp.lt.s32.totalorder %s144, 143
      %s146 = scalar_select %p145, %s144, 143
      %s147 = smul.addr %s146, 8
      %s148 = scalar_lea.vmem %s0, %s147
      %p149 = pneg %p35
      %p150 = pneg %p32
      %p151 = pneg %p56
      %p152 = pneg %p53
      %p153 = pneg %p77
      %p154 = pneg %p74
      %p155 = pneg %p103
      %p156 = pneg %p100
      %s157 = smul.u32 72, %s14
      %p158 = scmp.lt.s32.totalorder %s157, 143
      %s159 = scalar_select %p158, %s157, 143
      %s160 = smul.addr %s159, 8
      %s161 = scalar_lea.vmem %s3, %s160
      %s162 = smul.u32 72, %s14
      %p163 = scmp.lt.s32.totalorder %s162, 143
      %s164 = scalar_select %p163, %s162, 143
      %s165 = smul.addr %s164, 8
      %s166 = scalar_lea.vmem %s0, %s165
      %s167 = smul.u32 72, %s14
      %s168 = smul.u32 72, %s14
      %p169 = scmp.lt.s32.totalorder %s168, 143
      %s170 = scalar_select %p169, %s168, 143
      %s171 = smul.addr %s170, 8
      %s172 = scalar_lea.vmem %s3, %s171
      %s173 = smul.u32 72, %s14
      %v174 = vld [vmem:[%s166] sm:$0xff]
      %v175 = vld [vmem:[%s166 + $0x8] sm:$0xff]
      %v176 = vld [vmem:[%s166 + $0x10] sm:$0xff]
      %v177 = vld [vmem:[%s166 + $0x18] sm:$0xff]
      %v178 = vld [vmem:[%s166 + $0x20] sm:$0xff]
      %v179 = vld [vmem:[%s166 + $0x28] sm:$0xff]
      %v180 = vld [vmem:[%s166 + $0x30] sm:$0xff]
      %v181 = vld [vmem:[%s166 + $0x38] sm:$0xff]
      %v182 = vld [vmem:[%s166 + $0x40] sm:$0xff]
      %v183 = vld [vmem:[%s166 + $0x48] sm:$0xff]
      %v184 = vld [vmem:[%s166 + $0x50] sm:$0xff]
      %v185 = vld [vmem:[%s166 + $0x58] sm:$0xff]
      %v186 = vld [vmem:[%s166 + $0x60] sm:$0xff]
      %v187 = vld [vmem:[%s166 + $0x68] sm:$0xff]
      %v188 = vld [vmem:[%s166 + $0x70] sm:$0xff]
      %v189 = vld [vmem:[%s166 + $0x78] sm:$0xff]
      %v190 = vld [vmem:[%s166 + $0x80] sm:$0xff]
      %v191 = vld [vmem:[%s166 + $0x88] sm:$0xff]
      %v192 = vld [vmem:[%s166 + $0x90] sm:$0xff]
      %v193 = vld [vmem:[%s166 + $0x98] sm:$0xff]
      %v194 = vld [vmem:[%s166 + $0xa0] sm:$0xff]
      %v195 = vld [vmem:[%s166 + $0xa8] sm:$0xff]
      %v196 = vld [vmem:[%s166 + $0xb0] sm:$0xff]
      %v197 = vld [vmem:[%s166 + $0xb8] sm:$0xff]
      %v198 = vld [vmem:[%s166 + $0xc0] sm:$0xff]
      %v199 = vld [vmem:[%s166 + $0xc8] sm:$0xff]
      %v200 = vld [vmem:[%s166 + $0xd0] sm:$0xff]
      %v201 = vld [vmem:[%s166 + $0xd8] sm:$0xff]
      %v202 = vld [vmem:[%s166 + $0xe0] sm:$0xff]
      %v203 = vld [vmem:[%s166 + $0xe8] sm:$0xff]
      %v204 = vld [vmem:[%s166 + $0xf0] sm:$0xff]
      %v205 = vld [vmem:[%s166 + $0xf8] sm:$0xff]
      %v206 = vld [vmem:[%s166 + $0x100] sm:$0xff]
      %v207 = vld [vmem:[%s166 + $0x108] sm:$0xff]
      %v208 = vld [vmem:[%s166 + $0x110] sm:$0xff]
      %v209 = vld [vmem:[%s166 + $0x118] sm:$0xff]
      %v210 = vld [vmem:[%s166 + $0x120] sm:$0xff]
      %v211 = vld [vmem:[%s166 + $0x128] sm:$0xff]
      %v212 = vld [vmem:[%s166 + $0x130] sm:$0xff]
      %v213 = vld [vmem:[%s166 + $0x138] sm:$0xff]
      %v214 = vld [vmem:[%s166 + $0x140] sm:$0xff]
      %v215 = vld [vmem:[%s166 + $0x148] sm:$0xff]
      %v216 = vld [vmem:[%s166 + $0x150] sm:$0xff]
      %v217 = vld [vmem:[%s166 + $0x158] sm:$0xff]
      %v218 = vld [vmem:[%s166 + $0x160] sm:$0xff]
      %v219 = vld [vmem:[%s166 + $0x168] sm:$0xff]
      %v220 = vld [vmem:[%s166 + $0x170] sm:$0xff]
      %v221 = vld [vmem:[%s166 + $0x178] sm:$0xff]
      %v222 = vld [vmem:[%s166 + $0x180] sm:$0xff]
      %v223 = vld [vmem:[%s166 + $0x188] sm:$0xff]
      %v224 = vld [vmem:[%s166 + $0x190] sm:$0xff]
      %v225 = vld [vmem:[%s166 + $0x198] sm:$0xff]
      %v226 = vld [vmem:[%s166 + $0x1a0] sm:$0xff]
      %v227 = vld [vmem:[%s166 + $0x1a8] sm:$0xff]
      %v228 = vld [vmem:[%s166 + $0x1b0] sm:$0xff]
      %v229 = vld [vmem:[%s166 + $0x1b8] sm:$0xff]
      %v230 = vld [vmem:[%s166 + $0x1c0] sm:$0xff]
      %v231 = vld [vmem:[%s166 + $0x1c8] sm:$0xff]
      %v232 = vld [vmem:[%s166 + $0x1d0] sm:$0xff]
      %v233 = vld [vmem:[%s166 + $0x1d8] sm:$0xff]
      %v234 = vld [vmem:[%s166 + $0x1e0] sm:$0xff]
      %v235 = vld [vmem:[%s166 + $0x1e8] sm:$0xff]
      %v236 = vld [vmem:[%s166 + $0x1f0] sm:$0xff]
      %v237 = vld [vmem:[%s166 + $0x1f8] sm:$0xff]
      %v238 = vld [vmem:[%s166 + $0x200] sm:$0xff]
      %v239 = vld [vmem:[%s166 + $0x208] sm:$0xff]
      %v240 = vld [vmem:[%s166 + $0x210] sm:$0xff]
      %v241 = vld [vmem:[%s166 + $0x218] sm:$0xff]
      %v242 = vld [vmem:[%s166 + $0x220] sm:$0xff]
      %v243 = vld [vmem:[%s166 + $0x228] sm:$0xff]
      %v244 = vld [vmem:[%s166 + $0x230] sm:$0xff]
      %v245 = vld [vmem:[%s166 + $0x238] sm:$0xff]
      %v246 = vld [vmem:[%s1] sm:$0xff]
      %v247 = vld [vmem:[%s1 + $0x8] sm:$0xff]
      %v248 = vld [vmem:[%s1 + $0x10] sm:$0xff]
      %v249 = vld [vmem:[%s1 + $0x18] sm:$0x1]
      %v250 = vld [vmem:[%s2] sm:$0x1]
      %v252 = vlaneseq
      %v253 = vshrl.u32 %v252, 7
      %v254 = vsub.s32 0, %v253
      %v255 = vrot.slane %v250, %v254
      %vm257 = vcmask 203776
      %v259 = vsel %vm257, %v174, 0
      %v262 = vsel %vm257, %v175, 0
      %v265 = vsel %vm257, %v176, 0
      %v268 = vsel %vm257, %v177, 0
      %v271 = vsel %vm257, %v178, 0
      %v274 = vsel %vm257, %v179, 0
      %v277 = vsel %vm257, %v180, 0
      %v280 = vsel %vm257, %v181, 0
      %v283 = vsel %vm257, %v182, 0
      %v286 = vsel %vm257, %v183, 0
      %v289 = vsel %vm257, %v184, 0
      %v292 = vsel %vm257, %v185, 0
      %v295 = vsel %vm257, %v186, 0
      %v298 = vsel %vm257, %v187, 0
      %v301 = vsel %vm257, %v188, 0
      %v304 = vsel %vm257, %v189, 0
      %v307 = vsel %vm257, %v190, 0
      %v310 = vsel %vm257, %v191, 0
      %v313 = vsel %vm257, %v192, 0
      %v316 = vsel %vm257, %v193, 0
      %v319 = vsel %vm257, %v194, 0
      %v322 = vsel %vm257, %v195, 0
      %v325 = vsel %vm257, %v196, 0
      %v328 = vsel %vm257, %v197, 0
      %v331 = vsel %vm257, %v198, 0
      %v334 = vsel %vm257, %v199, 0
      %v337 = vsel %vm257, %v200, 0
      %v340 = vsel %vm257, %v201, 0
      %v343 = vsel %vm257, %v202, 0
      %v346 = vsel %vm257, %v203, 0
      %v349 = vsel %vm257, %v204, 0
      %v352 = vsel %vm257, %v205, 0
      %v355 = vsel %vm257, %v206, 0
      %v358 = vsel %vm257, %v207, 0
      %v361 = vsel %vm257, %v208, 0
      %v364 = vsel %vm257, %v209, 0
      %v367 = vsel %vm257, %v210, 0
      %v370 = vsel %vm257, %v211, 0
      %v373 = vsel %vm257, %v212, 0
      %v376 = vsel %vm257, %v213, 0
      %v379 = vsel %vm257, %v214, 0
      %v382 = vsel %vm257, %v215, 0
      %v385 = vsel %vm257, %v216, 0
      %v388 = vsel %vm257, %v217, 0
      %v391 = vsel %vm257, %v218, 0
      %v394 = vsel %vm257, %v219, 0
      %v397 = vsel %vm257, %v220, 0
      %v400 = vsel %vm257, %v221, 0
      %v403 = vsel %vm257, %v222, 0
      %v406 = vsel %vm257, %v223, 0
      %v409 = vsel %vm257, %v224, 0
      %v412 = vsel %vm257, %v225, 0
      %v415 = vsel %vm257, %v226, 0
      %v418 = vsel %vm257, %v227, 0
      %v421 = vsel %vm257, %v228, 0
      %v424 = vsel %vm257, %v229, 0
      %v427 = vsel %vm257, %v230, 0
      %v430 = vsel %vm257, %v231, 0
      %v433 = vsel %vm257, %v232, 0
      %v436 = vsel %vm257, %v233, 0
      %v439 = vsel %vm257, %v234, 0
      %v442 = vsel %vm257, %v235, 0
      %v445 = vsel %vm257, %v236, 0
      %v448 = vsel %vm257, %v237, 0
      %v451 = vsel %vm257, %v238, 0
      %v454 = vsel %vm257, %v239, 0
      %v457 = vsel %vm257, %v240, 0
      %v460 = vsel %vm257, %v241, 0
      %v463 = vsel %vm257, %v242, 0
      %v466 = vsel %vm257, %v243, 0
      %v469 = vsel %vm257, %v244, 0
      %v472 = vsel %vm257, %v245, 0
      %vm474 = vcmask 1040384
      %v476 = vsel %vm474, %v249, 0
      %478 = vmatprep.subr.mxu0 0.0
      %479 = vmatpush1.msra.mxu0 %v246
      %480 = vmatprep.subr.mxu0 0.0
      %481 = vmatpush1.msra.mxu0 %v247
      %482 = vmatprep.subr.mxu0 0.0
      %483 = vmatpush1.msra.mxu0 %v248
      %484 = vmatprep.subr.mxu0 0.0
      %485 = vmatpush1.msra.mxu0 %v476
      %486 = vmatprep.subr.mxu0 0.0
      %487 = vmatpush1.msra.mxu0 0.0
      %488 = vmatprep.subr.mxu0 0.0
      %489 = vmatpush1.msra.mxu0 0.0
      %490 = vmatprep.subr.mxu0 0.0
      %491 = vmatpush1.msra.mxu0 0.0
      %492 = vmatprep.subr.mxu0 0.0
      %493 = vmatpush1.msra.mxu0 0.0
      %494 = vmatprep.subr.mxu0 0.0
      %495 = vmatpush1.msra.mxu0 0.0
      %496 = vmatprep.subr.mxu0 0.0
      %497 = vmatpush1.msra.mxu0 0.0
      %498 = vmatprep.subr.mxu0 0.0
      %499 = vmatpush1.msra.mxu0 0.0
      %500 = vmatprep.subr.mxu0 0.0
      %501 = vmatpush1.msra.mxu0 0.0
      %502 = vmatprep.subr.mxu0 0.0
      %503 = vmatpush1.msra.mxu0 0.0
      %504 = vmatprep.subr.mxu0 0.0
      %505 = vmatpush1.msra.mxu0 0.0
      %506 = vmatprep.subr.mxu0 0.0
      %507 = vmatpush1.msra.mxu0 0.0
      %508 = vmatprep.subr.mxu0 0.0
      %509 = vmatpush1.msra.mxu0 0.0
      %510 = vmatprep.subr.mxu0 0.0
      %511 = vmatpush1.msra.mxu0 0.0
      %512 = vmatprep.subr.mxu0 0.0
      %513 = vmatpush1.msra.mxu0 0.0
      %514 = vmatprep.subr.mxu0 0.0
      %515 = vmatpush1.msra.mxu0 0.0
      %516 = vmatprep.subr.mxu0 0.0
      %517 = vmatpush1.msra.mxu0 0.0
      %518 = vmatprep.subr.mxu0 0.0
      %519 = vmatpush1.msra.mxu0 0.0
      %520 = vmatprep.subr.mxu0 0.0
      %521 = vmatpush1.msra.mxu0 0.0
      %522 = vmatprep.subr.mxu0 0.0
      %523 = vmatpush1.msra.mxu0 0.0
      %524 = vmatprep.subr.mxu0 0.0
      %525 = vmatpush1.msra.mxu0 0.0
      %526 = vmatprep.subr.mxu0 0.0
      %527 = vmatpush1.msra.mxu0 0.0
      %528 = vmatprep.subr.mxu0 0.0
      %529 = vmatpush1.msra.mxu0 0.0
      %530 = vmatprep.subr.mxu0 0.0
      %531 = vmatpush1.msra.mxu0 0.0
      %532 = vmatprep.subr.mxu0 0.0
      %533 = vmatpush1.msra.mxu0 0.0
      %534 = vmatprep.subr.mxu0 0.0
      %535 = vmatpush1.msra.mxu0 0.0
      %536 = vmatprep.subr.mxu0 0.0
      %537 = vmatpush1.msra.mxu0 0.0
      %538 = vmatprep.subr.mxu0 0.0
      %539 = vmatpush1.msra.mxu0 0.0
      %540 = vmatprep.subr.mxu0 0.0
      %541 = vmatpush1.msra.mxu0 0.0
      %542 = vmatprep.mubr.f32.mxu0 0.0
      %543 = vmatmul.mubr.f32.gmra.mrb[0].mxu0 %v259
      %v544 = vpop.f32.mrb[0].mxu0
      %v545 = vadd.f32 %v255, %v544
      %v546 = vpop.f32.mrb[0].mxu0
      %547 = vmatprep.mubr.f32.mxu0 0.0
      %548 = vmatmul.mubr.f32.gmra.mrb[0].mxu0 %v262
      %v549 = vpop.f32.mrb[0].mxu0
      %v550 = vadd.f32 %v255, %v549
      %v551 = vpop.f32.mrb[0].mxu0
      %552 = vmatprep.mubr.f32.mxu0 0.0
      %553 = vmatmul.mubr.f32.gmra.mrb[0].mxu0 %v265
      %v554 = vpop.f32.mrb[0].mxu0
      %v555 = vadd.f32 %v255, %v554
      %v556 = vpop.f32.mrb[0].mxu0
      %557 = vmatprep.mubr.f32.mxu0 0.0
      %558 = vmatmul.mubr.f32.gmra.mrb[0].mxu0 %v268
      %v559 = vpop.f32.mrb[0].mxu0
      %v560 = vadd.f32 %v255, %v559
      %v561 = vpop.f32.mrb[0].mxu0
      %562 = vmatprep.mubr.f32.mxu0 0.0
      %563 = vmatmul.mubr.f32.gmra.mrb[0].mxu0 %v271
      %v564 = vpop.f32.mrb[0].mxu0
      %v565 = vadd.f32 %v255, %v564
      %v566 = vpop.f32.mrb[0].mxu0
      %567 = vmatprep.mubr.f32.mxu0 0.0
      %568 = vmatmul.mubr.f32.gmra.mrb[0].mxu0 %v274
      %v569 = vpop.f32.mrb[0].mxu0
      %v570 = vadd.f32 %v255, %v569
      %v571 = vpop.f32.mrb[0].mxu0
      %572 = vmatprep.mubr.f32.mxu0 0.0
      %573 = vmatmul.mubr.f32.gmra.mrb[0].mxu0 %v277
      %v574 = vpop.f32.mrb[0].mxu0
      %v575 = vadd.f32 %v255, %v574
      %v576 = vpop.f32.mrb[0].mxu0
      %577 = vmatprep.mubr.f32.mxu0 0.0
      %578 = vmatmul.mubr.f32.gmra.mrb[0].mxu0 %v280
      %v579 = vpop.f32.mrb[0].mxu0
      %v580 = vadd.f32 %v255, %v579
      %v581 = vpop.f32.mrb[0].mxu0
      %582 = vmatprep.mubr.f32.mxu0 0.0
      %583 = vmatmul.mubr.f32.gmra.mrb[0].mxu0 %v283
      %v584 = vpop.f32.mrb[0].mxu0
      %v585 = vadd.f32 %v255, %v584
      %v586 = vpop.f32.mrb[0].mxu0
      %587 = vmatprep.mubr.f32.mxu0 0.0
      %588 = vmatmul.mubr.f32.gmra.mrb[0].mxu0 %v286
      %v589 = vpop.f32.mrb[0].mxu0
      %v590 = vadd.f32 %v255, %v589
      %v591 = vpop.f32.mrb[0].mxu0
      %592 = vmatprep.mubr.f32.mxu0 0.0
      %593 = vmatmul.mubr.f32.gmra.mrb[0].mxu0 %v289
      %v594 = vpop.f32.mrb[0].mxu0
      %v595 = vadd.f32 %v255, %v594
      %v596 = vpop.f32.mrb[0].mxu0
      %597 = vmatprep.mubr.f32.mxu0 0.0
      %598 = vmatmul.mubr.f32.gmra.mrb[0].mxu0 %v292
      %v599 = vpop.f32.mrb[0].mxu0
      %v600 = vadd.f32 %v255, %v599
      %v601 = vpop.f32.mrb[0].mxu0
      %602 = vmatprep.mubr.f32.mxu0 0.0
      %603 = vmatmul.mubr.f32.gmra.mrb[0].mxu0 %v295
      %v604 = vpop.f32.mrb[0].mxu0
      %v605 = vadd.f32 %v255, %v604
      %v606 = vpop.f32.mrb[0].mxu0
      %607 = vmatprep.mubr.f32.mxu0 0.0
      %608 = vmatmul.mubr.f32.gmra.mrb[0].mxu0 %v298
      %v609 = vpop.f32.mrb[0].mxu0
      %v610 = vadd.f32 %v255, %v609
      %v611 = vpop.f32.mrb[0].mxu0
      %612 = vmatprep.mubr.f32.mxu0 0.0
      %613 = vmatmul.mubr.f32.gmra.mrb[0].mxu0 %v301
      %v614 = vpop.f32.mrb[0].mxu0
      %v615 = vadd.f32 %v255, %v614
      %v616 = vpop.f32.mrb[0].mxu0
      %617 = vmatprep.mubr.f32.mxu0 0.0
      %618 = vmatmul.mubr.f32.gmra.mrb[0].mxu0 %v304
      %v619 = vpop.f32.mrb[0].mxu0
      %v620 = vadd.f32 %v255, %v619
      %v621 = vpop.f32.mrb[0].mxu0
      %622 = vmatprep.mubr.f32.mxu0 0.0
      %623 = vmatmul.mubr.f32.gmra.mrb[0].mxu0 %v307
      %v624 = vpop.f32.mrb[0].mxu0
      %v625 = vadd.f32 %v255, %v624
      %v626 = vpop.f32.mrb[0].mxu0
      %627 = vmatprep.mubr.f32.mxu0 0.0
      %628 = vmatmul.mubr.f32.gmra.mrb[0].mxu0 %v310
      %v629 = vpop.f32.mrb[0].mxu0
      %v630 = vadd.f32 %v255, %v629
      %v631 = vpop.f32.mrb[0].mxu0
      %632 = vmatprep.mubr.f32.mxu0 0.0
      %633 = vmatmul.mubr.f32.gmra.mrb[0].mxu0 %v313
      %v634 = vpop.f32.mrb[0].mxu0
      %v635 = vadd.f32 %v255, %v634
      %v636 = vpop.f32.mrb[0].mxu0
      %637 = vmatprep.mubr.f32.mxu0 0.0
      %638 = vmatmul.mubr.f32.gmra.mrb[0].mxu0 %v316
      %v639 = vpop.f32.mrb[0].mxu0
      %v640 = vadd.f32 %v255, %v639
      %v641 = vpop.f32.mrb[0].mxu0
      %642 = vmatprep.mubr.f32.mxu0 0.0
      %643 = vmatmul.mubr.f32.gmra.mrb[0].mxu0 %v319
      %v644 = vpop.f32.mrb[0].mxu0
      %v645 = vadd.f32 %v255, %v644
      %v646 = vpop.f32.mrb[0].mxu0
      %647 = vmatprep.mubr.f32.mxu0 0.0
      %648 = vmatmul.mubr.f32.gmra.mrb[0].mxu0 %v322
      %v649 = vpop.f32.mrb[0].mxu0
      %v650 = vadd.f32 %v255, %v649
      %v651 = vpop.f32.mrb[0].mxu0
      %652 = vmatprep.mubr.f32.mxu0 0.0
      %653 = vmatmul.mubr.f32.gmra.mrb[0].mxu0 %v325
      %v654 = vpop.f32.mrb[0].mxu0
      %v655 = vadd.f32 %v255, %v654
      %v656 = vpop.f32.mrb[0].mxu0
      %657 = vmatprep.mubr.f32.mxu0 0.0
      %658 = vmatmul.mubr.f32.gmra.mrb[0].mxu0 %v328
      %v659 = vpop.f32.mrb[0].mxu0
      %v660 = vadd.f32 %v255, %v659
      %v661 = vpop.f32.mrb[0].mxu0
      %662 = vmatprep.mubr.f32.mxu0 0.0
      %663 = vmatmul.mubr.f32.gmra.mrb[0].mxu0 %v331
      %v664 = vpop.f32.mrb[0].mxu0
      %v665 = vadd.f32 %v255, %v664
      %v666 = vpop.f32.mrb[0].mxu0
      %667 = vmatprep.mubr.f32.mxu0 0.0
      %668 = vmatmul.mubr.f32.gmra.mrb[0].mxu0 %v334
      %v669 = vpop.f32.mrb[0].mxu0
      %v670 = vadd.f32 %v255, %v669
      %v671 = vpop.f32.mrb[0].mxu0
      %672 = vmatprep.mubr.f32.mxu0 0.0
      %673 = vmatmul.mubr.f32.gmra.mrb[0].mxu0 %v337
      %v674 = vpop.f32.mrb[0].mxu0
      %v675 = vadd.f32 %v255, %v674
      %v676 = vpop.f32.mrb[0].mxu0
      %677 = vmatprep.mubr.f32.mxu0 0.0
      %678 = vmatmul.mubr.f32.gmra.mrb[0].mxu0 %v340
      %v679 = vpop.f32.mrb[0].mxu0
      %v680 = vadd.f32 %v255, %v679
      %v681 = vpop.f32.mrb[0].mxu0
      %682 = vmatprep.mubr.f32.mxu0 0.0
      %683 = vmatmul.mubr.f32.gmra.mrb[0].mxu0 %v343
      %v684 = vpop.f32.mrb[0].mxu0
      %v685 = vadd.f32 %v255, %v684
      %v686 = vpop.f32.mrb[0].mxu0
      %687 = vmatprep.mubr.f32.mxu0 0.0
      %688 = vmatmul.mubr.f32.gmra.mrb[0].mxu0 %v346
      %v689 = vpop.f32.mrb[0].mxu0
      %v690 = vadd.f32 %v255, %v689
      %v691 = vpop.f32.mrb[0].mxu0
      %692 = vmatprep.mubr.f32.mxu0 0.0
      %693 = vmatmul.mubr.f32.gmra.mrb[0].mxu0 %v349
      %v694 = vpop.f32.mrb[0].mxu0
      %v695 = vadd.f32 %v255, %v694
      %v696 = vpop.f32.mrb[0].mxu0
      %697 = vmatprep.mubr.f32.mxu0 0.0
      %698 = vmatmul.mubr.f32.gmra.mrb[0].mxu0 %v352
      %v699 = vpop.f32.mrb[0].mxu0
      %v700 = vadd.f32 %v255, %v699
      %v701 = vpop.f32.mrb[0].mxu0
      %702 = vmatprep.mubr.f32.mxu0 0.0
      %703 = vmatmul.mubr.f32.gmra.mrb[0].mxu0 %v355
      %v704 = vpop.f32.mrb[0].mxu0
      %v705 = vadd.f32 %v255, %v704
      %v706 = vpop.f32.mrb[0].mxu0
      %707 = vmatprep.mubr.f32.mxu0 0.0
      %708 = vmatmul.mubr.f32.gmra.mrb[0].mxu0 %v358
      %v709 = vpop.f32.mrb[0].mxu0
      %v710 = vadd.f32 %v255, %v709
      %v711 = vpop.f32.mrb[0].mxu0
      %712 = vmatprep.mubr.f32.mxu0 0.0
      %713 = vmatmul.mubr.f32.gmra.mrb[0].mxu0 %v361
      %v714 = vpop.f32.mrb[0].mxu0
      %v715 = vadd.f32 %v255, %v714
      %v716 = vpop.f32.mrb[0].mxu0
      %717 = vmatprep.mubr.f32.mxu0 0.0
      %718 = vmatmul.mubr.f32.gmra.mrb[0].mxu0 %v364
      %v719 = vpop.f32.mrb[0].mxu0
      %v720 = vadd.f32 %v255, %v719
      %v721 = vpop.f32.mrb[0].mxu0
      %722 = vmatprep.mubr.f32.mxu0 0.0
      %723 = vmatmul.mubr.f32.gmra.mrb[0].mxu0 %v367
      %v724 = vpop.f32.mrb[0].mxu0
      %v725 = vadd.f32 %v255, %v724
      %v726 = vpop.f32.mrb[0].mxu0
      %727 = vmatprep.mubr.f32.mxu0 0.0
      %728 = vmatmul.mubr.f32.gmra.mrb[0].mxu0 %v370
      %v729 = vpop.f32.mrb[0].mxu0
      %v730 = vadd.f32 %v255, %v729
      %v731 = vpop.f32.mrb[0].mxu0
      %732 = vmatprep.mubr.f32.mxu0 0.0
      %733 = vmatmul.mubr.f32.gmra.mrb[0].mxu0 %v373
      %v734 = vpop.f32.mrb[0].mxu0
      %v735 = vadd.f32 %v255, %v734
      %v736 = vpop.f32.mrb[0].mxu0
      %737 = vmatprep.mubr.f32.mxu0 0.0
      %738 = vmatmul.mubr.f32.gmra.mrb[0].mxu0 %v376
      %v739 = vpop.f32.mrb[0].mxu0
      %v740 = vadd.f32 %v255, %v739
      %v741 = vpop.f32.mrb[0].mxu0
      %742 = vmatprep.mubr.f32.mxu0 0.0
      %743 = vmatmul.mubr.f32.gmra.mrb[0].mxu0 %v379
      %v744 = vpop.f32.mrb[0].mxu0
      %v745 = vadd.f32 %v255, %v744
      %v746 = vpop.f32.mrb[0].mxu0
      %747 = vmatprep.mubr.f32.mxu0 0.0
      %748 = vmatmul.mubr.f32.gmra.mrb[0].mxu0 %v382
      %v749 = vpop.f32.mrb[0].mxu0
      %v750 = vadd.f32 %v255, %v749
      %v751 = vpop.f32.mrb[0].mxu0
      %752 = vmatprep.mubr.f32.mxu0 0.0
      %753 = vmatmul.mubr.f32.gmra.mrb[0].mxu0 %v385
      %v754 = vpop.f32.mrb[0].mxu0
      %v755 = vadd.f32 %v255, %v754
      %v756 = vpop.f32.mrb[0].mxu0
      %757 = vmatprep.mubr.f32.mxu0 0.0
      %758 = vmatmul.mubr.f32.gmra.mrb[0].mxu0 %v388
      %v759 = vpop.f32.mrb[0].mxu0
      %v760 = vadd.f32 %v255, %v759
      %v761 = vpop.f32.mrb[0].mxu0
      %762 = vmatprep.mubr.f32.mxu0 0.0
      %763 = vmatmul.mubr.f32.gmra.mrb[0].mxu0 %v391
      %v764 = vpop.f32.mrb[0].mxu0
      %v765 = vadd.f32 %v255, %v764
      %v766 = vpop.f32.mrb[0].mxu0
      %767 = vmatprep.mubr.f32.mxu0 0.0
      %768 = vmatmul.mubr.f32.gmra.mrb[0].mxu0 %v394
      %v769 = vpop.f32.mrb[0].mxu0
      %v770 = vadd.f32 %v255, %v769
      %v771 = vpop.f32.mrb[0].mxu0
      %772 = vmatprep.mubr.f32.mxu0 0.0
      %773 = vmatmul.mubr.f32.gmra.mrb[0].mxu0 %v397
      %v774 = vpop.f32.mrb[0].mxu0
      %v775 = vadd.f32 %v255, %v774
      %v776 = vpop.f32.mrb[0].mxu0
      %777 = vmatprep.mubr.f32.mxu0 0.0
      %778 = vmatmul.mubr.f32.gmra.mrb[0].mxu0 %v400
      %v779 = vpop.f32.mrb[0].mxu0
      %v780 = vadd.f32 %v255, %v779
      %v781 = vpop.f32.mrb[0].mxu0
      %782 = vmatprep.mubr.f32.mxu0 0.0
      %783 = vmatmul.mubr.f32.gmra.mrb[0].mxu0 %v403
      %v784 = vpop.f32.mrb[0].mxu0
      %v785 = vadd.f32 %v255, %v784
      %v786 = vpop.f32.mrb[0].mxu0
      %787 = vmatprep.mubr.f32.mxu0 0.0
      %788 = vmatmul.mubr.f32.gmra.mrb[0].mxu0 %v406
      %v789 = vpop.f32.mrb[0].mxu0
      %v790 = vadd.f32 %v255, %v789
      %v791 = vpop.f32.mrb[0].mxu0
      %792 = vmatprep.mubr.f32.mxu0 0.0
      %793 = vmatmul.mubr.f32.gmra.mrb[0].mxu0 %v409
      %v794 = vpop.f32.mrb[0].mxu0
      %v795 = vadd.f32 %v255, %v794
      %v796 = vpop.f32.mrb[0].mxu0
      %797 = vmatprep.mubr.f32.mxu0 0.0
      %798 = vmatmul.mubr.f32.gmra.mrb[0].mxu0 %v412
      %v799 = vpop.f32.mrb[0].mxu0
      %v800 = vadd.f32 %v255, %v799
      %v801 = vpop.f32.mrb[0].mxu0
      %802 = vmatprep.mubr.f32.mxu0 0.0
      %803 = vmatmul.mubr.f32.gmra.mrb[0].mxu0 %v415
      %v804 = vpop.f32.mrb[0].mxu0
      %v805 = vadd.f32 %v255, %v804
      %v806 = vpop.f32.mrb[0].mxu0
      %807 = vmatprep.mubr.f32.mxu0 0.0
      %808 = vmatmul.mubr.f32.gmra.mrb[0].mxu0 %v418
      %v809 = vpop.f32.mrb[0].mxu0
      %v810 = vadd.f32 %v255, %v809
      %v811 = vpop.f32.mrb[0].mxu0
      %812 = vmatprep.mubr.f32.mxu0 0.0
      %813 = vmatmul.mubr.f32.gmra.mrb[0].mxu0 %v421
      %v814 = vpop.f32.mrb[0].mxu0
      %v815 = vadd.f32 %v255, %v814
      %v816 = vpop.f32.mrb[0].mxu0
      %817 = vmatprep.mubr.f32.mxu0 0.0
      %818 = vmatmul.mubr.f32.gmra.mrb[0].mxu0 %v424
      %v819 = vpop.f32.mrb[0].mxu0
      %v820 = vadd.f32 %v255, %v819
      %v821 = vpop.f32.mrb[0].mxu0
      %822 = vmatprep.mubr.f32.mxu0 0.0
      %823 = vmatmul.mubr.f32.gmra.mrb[0].mxu0 %v427
      %v824 = vpop.f32.mrb[0].mxu0
      %v825 = vadd.f32 %v255, %v824
      %v826 = vpop.f32.mrb[0].mxu0
      %827 = vmatprep.mubr.f32.mxu0 0.0
      %828 = vmatmul.mubr.f32.gmra.mrb[0].mxu0 %v430
      %v829 = vpop.f32.mrb[0].mxu0
      %v830 = vadd.f32 %v255, %v829
      %v831 = vpop.f32.mrb[0].mxu0
      %832 = vmatprep.mubr.f32.mxu0 0.0
      %833 = vmatmul.mubr.f32.gmra.mrb[0].mxu0 %v433
      %v834 = vpop.f32.mrb[0].mxu0
      %v835 = vadd.f32 %v255, %v834
      %v836 = vpop.f32.mrb[0].mxu0
      %837 = vmatprep.mubr.f32.mxu0 0.0
      %838 = vmatmul.mubr.f32.gmra.mrb[0].mxu0 %v436
      %v839 = vpop.f32.mrb[0].mxu0
      %v840 = vadd.f32 %v255, %v839
      %v841 = vpop.f32.mrb[0].mxu0
      %842 = vmatprep.mubr.f32.mxu0 0.0
      %843 = vmatmul.mubr.f32.gmra.mrb[0].mxu0 %v439
      %v844 = vpop.f32.mrb[0].mxu0
      %v845 = vadd.f32 %v255, %v844
      %v846 = vpop.f32.mrb[0].mxu0
      %847 = vmatprep.mubr.f32.mxu0 0.0
      %848 = vmatmul.mubr.f32.gmra.mrb[0].mxu0 %v442
      %v849 = vpop.f32.mrb[0].mxu0
      %v850 = vadd.f32 %v255, %v849
      %v851 = vpop.f32.mrb[0].mxu0
      %852 = vmatprep.mubr.f32.mxu0 0.0
      %853 = vmatmul.mubr.f32.gmra.mrb[0].mxu0 %v445
      %v854 = vpop.f32.mrb[0].mxu0
      %v855 = vadd.f32 %v255, %v854
      %v856 = vpop.f32.mrb[0].mxu0
      %857 = vmatprep.mubr.f32.mxu0 0.0
      %858 = vmatmul.mubr.f32.gmra.mrb[0].mxu0 %v448
      %v859 = vpop.f32.mrb[0].mxu0
      %v860 = vadd.f32 %v255, %v859
      %v861 = vpop.f32.mrb[0].mxu0
      %862 = vmatprep.mubr.f32.mxu0 0.0
      %863 = vmatmul.mubr.f32.gmra.mrb[0].mxu0 %v451
      %v864 = vpop.f32.mrb[0].mxu0
      %v865 = vadd.f32 %v255, %v864
      %v866 = vpop.f32.mrb[0].mxu0
      %867 = vmatprep.mubr.f32.mxu0 0.0
      %868 = vmatmul.mubr.f32.gmra.mrb[0].mxu0 %v454
      %v869 = vpop.f32.mrb[0].mxu0
      %v870 = vadd.f32 %v255, %v869
      %v871 = vpop.f32.mrb[0].mxu0
      %872 = vmatprep.mubr.f32.mxu0 0.0
      %873 = vmatmul.mubr.f32.gmra.mrb[0].mxu0 %v457
      %v874 = vpop.f32.mrb[0].mxu0
      %v875 = vadd.f32 %v255, %v874
      %v876 = vpop.f32.mrb[0].mxu0
      %877 = vmatprep.mubr.f32.mxu0 0.0
      %878 = vmatmul.mubr.f32.gmra.mrb[0].mxu0 %v460
      %v879 = vpop.f32.mrb[0].mxu0
      %v880 = vadd.f32 %v255, %v879
      %v881 = vpop.f32.mrb[0].mxu0
      %882 = vmatprep.mubr.f32.mxu0 0.0
      %883 = vmatmul.mubr.f32.gmra.mrb[0].mxu0 %v463
      %v884 = vpop.f32.mrb[0].mxu0
      %v885 = vadd.f32 %v255, %v884
      %v886 = vpop.f32.mrb[0].mxu0
      %887 = vmatprep.mubr.f32.mxu0 0.0
      %888 = vmatmul.mubr.f32.gmra.mrb[0].mxu0 %v466
      %v889 = vpop.f32.mrb[0].mxu0
      %v890 = vadd.f32 %v255, %v889
      %v891 = vpop.f32.mrb[0].mxu0
      %892 = vmatprep.mubr.f32.mxu0 0.0
      %893 = vmatmul.mubr.f32.gmra.mrb[0].mxu0 %v469
      %v894 = vpop.f32.mrb[0].mxu0
      %v895 = vadd.f32 %v255, %v894
      %v896 = vpop.f32.mrb[0].mxu0
      %897 = vmatprep.mubr.f32.mxu0 0.0
      %898 = vmatmul.mubr.f32.gmra.mrb[0].mxu0 %v472
      %v899 = vpop.f32.mrb[0].mxu0
      %v900 = vadd.f32 %v255, %v899
      %v901 = vpop.f32.mrb[0].mxu0
      %902 = vdwg.mxu0
      %v903 = vmax.f32 %v545, 0.0
      %v904 = vmax.f32 %v550, 0.0
      %v905 = vmax.f32 %v555, 0.0
      %v906 = vmax.f32 %v560, 0.0
      %v907 = vmax.f32 %v565, 0.0
      %v908 = vmax.f32 %v570, 0.0
      %v909 = vmax.f32 %v575, 0.0
      %v910 = vmax.f32 %v580, 0.0
      %v911 = vmax.f32 %v585, 0.0
      %v912 = vmax.f32 %v590, 0.0
      %v913 = vmax.f32 %v595, 0.0
      %v914 = vmax.f32 %v600, 0.0
      %v915 = vmax.f32 %v605, 0.0
      %v916 = vmax.f32 %v610, 0.0
      %v917 = vmax.f32 %v615, 0.0
      %v918 = vmax.f32 %v620, 0.0
      %v919 = vmax.f32 %v625, 0.0
      %v920 = vmax.f32 %v630, 0.0
      %v921 = vmax.f32 %v635, 0.0
      %v922 = vmax.f32 %v640, 0.0
      %v923 = vmax.f32 %v645, 0.0
      %v924 = vmax.f32 %v650, 0.0
      %v925 = vmax.f32 %v655, 0.0
      %v926 = vmax.f32 %v660, 0.0
      %v927 = vmax.f32 %v665, 0.0
      %v928 = vmax.f32 %v670, 0.0
      %v929 = vmax.f32 %v675, 0.0
      %v930 = vmax.f32 %v680, 0.0
      %v931 = vmax.f32 %v685, 0.0
      %v932 = vmax.f32 %v690, 0.0
      %v933 = vmax.f32 %v695, 0.0
      %v934 = vmax.f32 %v700, 0.0
      %v935 = vmax.f32 %v705, 0.0
      %v936 = vmax.f32 %v710, 0.0
      %v937 = vmax.f32 %v715, 0.0
      %v938 = vmax.f32 %v720, 0.0
      %v939 = vmax.f32 %v725, 0.0
      %v940 = vmax.f32 %v730, 0.0
      %v941 = vmax.f32 %v735, 0.0
      %v942 = vmax.f32 %v740, 0.0
      %v943 = vmax.f32 %v745, 0.0
      %v944 = vmax.f32 %v750, 0.0
      %v945 = vmax.f32 %v755, 0.0
      %v946 = vmax.f32 %v760, 0.0
      %v947 = vmax.f32 %v765, 0.0
      %v948 = vmax.f32 %v770, 0.0
      %v949 = vmax.f32 %v775, 0.0
      %v950 = vmax.f32 %v780, 0.0
      %v951 = vmax.f32 %v785, 0.0
      %v952 = vmax.f32 %v790, 0.0
      %v953 = vmax.f32 %v795, 0.0
      %v954 = vmax.f32 %v800, 0.0
      %v955 = vmax.f32 %v805, 0.0
      %v956 = vmax.f32 %v810, 0.0
      %v957 = vmax.f32 %v815, 0.0
      %v958 = vmax.f32 %v820, 0.0
      %v959 = vmax.f32 %v825, 0.0
      %v960 = vmax.f32 %v830, 0.0
      %v961 = vmax.f32 %v835, 0.0
      %v962 = vmax.f32 %v840, 0.0
      %v963 = vmax.f32 %v845, 0.0
      %v964 = vmax.f32 %v850, 0.0
      %v965 = vmax.f32 %v855, 0.0
      %v966 = vmax.f32 %v860, 0.0
      %v967 = vmax.f32 %v865, 0.0
      %v968 = vmax.f32 %v870, 0.0
      %v969 = vmax.f32 %v875, 0.0
      %v970 = vmax.f32 %v880, 0.0
      %v971 = vmax.f32 %v885, 0.0
      %v972 = vmax.f32 %v890, 0.0
      %v973 = vmax.f32 %v895, 0.0
      %v974 = vmax.f32 %v900, 0.0
      %975 = vst [vmem:[%s172] sm:$0xff] %v903
      %976 = vst [vmem:[%s172 + $0x8] sm:$0xff] %v904
      %977 = vst [vmem:[%s172 + $0x10] sm:$0xff] %v905
      %978 = vst [vmem:[%s172 + $0x18] sm:$0xff] %v906
      %979 = vst [vmem:[%s172 + $0x20] sm:$0xff] %v907
      %980 = vst [vmem:[%s172 + $0x28] sm:$0xff] %v908
      %981 = vst [vmem:[%s172 + $0x30] sm:$0xff] %v909
      %982 = vst [vmem:[%s172 + $0x38] sm:$0xff] %v910
      %983 = vst [vmem:[%s172 + $0x40] sm:$0xff] %v911
      %984 = vst [vmem:[%s172 + $0x48] sm:$0xff] %v912
      %985 = vst [vmem:[%s172 + $0x50] sm:$0xff] %v913
      %986 = vst [vmem:[%s172 + $0x58] sm:$0xff] %v914
      %987 = vst [vmem:[%s172 + $0x60] sm:$0xff] %v915
      %988 = vst [vmem:[%s172 + $0x68] sm:$0xff] %v916
      %989 = vst [vmem:[%s172 + $0x70] sm:$0xff] %v917
      %990 = vst [vmem:[%s172 + $0x78] sm:$0xff] %v918
      %991 = vst [vmem:[%s172 + $0x80] sm:$0xff] %v919
      %992 = vst [vmem:[%s172 + $0x88] sm:$0xff] %v920
      %993 = vst [vmem:[%s172 + $0x90] sm:$0xff] %v921
      %994 = vst [vmem:[%s172 + $0x98] sm:$0xff] %v922
      %995 = vst [vmem:[%s172 + $0xa0] sm:$0xff] %v923
      %996 = vst [vmem:[%s172 + $0xa8] sm:$0xff] %v924
      %997 = vst [vmem:[%s172 + $0xb0] sm:$0xff] %v925
      %998 = vst [vmem:[%s172 + $0xb8] sm:$0xff] %v926
      %999 = vst [vmem:[%s172 + $0xc0] sm:$0xff] %v927
      %1000 = vst [vmem:[%s172 + $0xc8] sm:$0xff] %v928
      %1001 = vst [vmem:[%s172 + $0xd0] sm:$0xff] %v929
      %1002 = vst [vmem:[%s172 + $0xd8] sm:$0xff] %v930
      %1003 = vst [vmem:[%s172 + $0xe0] sm:$0xff] %v931
      %1004 = vst [vmem:[%s172 + $0xe8] sm:$0xff] %v932
      %1005 = vst [vmem:[%s172 + $0xf0] sm:$0xff] %v933
      %1006 = vst [vmem:[%s172 + $0xf8] sm:$0xff] %v934
      %1007 = vst [vmem:[%s172 + $0x100] sm:$0xff] %v935
      %1008 = vst [vmem:[%s172 + $0x108] sm:$0xff] %v936
      %1009 = vst [vmem:[%s172 + $0x110] sm:$0xff] %v937
      %1010 = vst [vmem:[%s172 + $0x118] sm:$0xff] %v938
      %1011 = vst [vmem:[%s172 + $0x120] sm:$0xff] %v939
      %1012 = vst [vmem:[%s172 + $0x128] sm:$0xff] %v940
      %1013 = vst [vmem:[%s172 + $0x130] sm:$0xff] %v941
      %1014 = vst [vmem:[%s172 + $0x138] sm:$0xff] %v942
      %1015 = vst [vmem:[%s172 + $0x140] sm:$0xff] %v943
      %1016 = vst [vmem:[%s172 + $0x148] sm:$0xff] %v944
      %1017 = vst [vmem:[%s172 + $0x150] sm:$0xff] %v945
      %1018 = vst [vmem:[%s172 + $0x158] sm:$0xff] %v946
      %1019 = vst [vmem:[%s172 + $0x160] sm:$0xff] %v947
      %1020 = vst [vmem:[%s172 + $0x168] sm:$0xff] %v948
      %1021 = vst [vmem:[%s172 + $0x170] sm:$0xff] %v949
      %1022 = vst [vmem:[%s172 + $0x178] sm:$0xff] %v950
      %1023 = vst [vmem:[%s172 + $0x180] sm:$0xff] %v951
      %1024 = vst [vmem:[%s172 + $0x188] sm:$0xff] %v952
      %1025 = vst [vmem:[%s172 + $0x190] sm:$0xff] %v953
      %1026 = vst [vmem:[%s172 + $0x198] sm:$0xff] %v954
      %1027 = vst [vmem:[%s172 + $0x1a0] sm:$0xff] %v955
      %1028 = vst [vmem:[%s172 + $0x1a8] sm:$0xff] %v956
      %1029 = vst [vmem:[%s172 + $0x1b0] sm:$0xff] %v957
      %1030 = vst [vmem:[%s172 + $0x1b8] sm:$0xff] %v958
      %1031 = vst [vmem:[%s172 + $0x1c0] sm:$0xff] %v959
      %1032 = vst [vmem:[%s172 + $0x1c8] sm:$0xff] %v960
      %1033 = vst [vmem:[%s172 + $0x1d0] sm:$0xff] %v961
      %1034 = vst [vmem:[%s172 + $0x1d8] sm:$0xff] %v962
      %1035 = vst [vmem:[%s172 + $0x1e0] sm:$0xff] %v963
      %1036 = vst [vmem:[%s172 + $0x1e8] sm:$0xff] %v964
      %1037 = vst [vmem:[%s172 + $0x1f0] sm:$0xff] %v965
      %1038 = vst [vmem:[%s172 + $0x1f8] sm:$0xff] %v966
      %1039 = vst [vmem:[%s172 + $0x200] sm:$0xff] %v967
      %1040 = vst [vmem:[%s172 + $0x208] sm:$0xff] %v968
      %1041 = vst [vmem:[%s172 + $0x210] sm:$0xff] %v969
      %1042 = vst [vmem:[%s172 + $0x218] sm:$0xff] %v970
      %1043 = vst [vmem:[%s172 + $0x220] sm:$0xff] %v971
      %1044 = vst [vmem:[%s172 + $0x228] sm:$0xff] %v972
      %1045 = vst [vmem:[%s172 + $0x230] sm:$0xff] %v973
      %1046 = vst [vmem:[%s172 + $0x238] sm:$0xff] %v974
      %s1047 = smul.u32 72, %s14
      %p1048 = scmp.lt.s32.totalorder %s1047, 143
      %s1049 = scalar_select %p1048, %s1047, 143
      %s1050 = smul.addr %s1049, 8
      %s1051 = scalar_lea.vmem %s3, %s1050
      // Predicated region
      $region33: #{torch_model_forward.3} parent=31 // pred_check
        %p1052 = pneg %p100
      $region34: #{torch_model_forward.3} parent=31 // pred_check_branch
        %1054 = sbr.rel (%p1052) target = $region36
      $region35: #{torch_model_forward.3} parent=31 // pred_region
        %s1055 = smul.u32 72, %s14
      $region36: #{torch_model_forward.3} parent=31 // pred_fallthru
        _
    $region32: #{torch_model_forward.3} parent=5 // pred_fallthru
      _
    %p1056 = scmp.le.s32.totalorder 2, %s9
    // Predicated region
    $region37: #{torch_model_forward.3} parent=5 // pred_check
      %p1057 = pneg %p1056
    $region38: #{torch_model_forward.3} parent=5 // pred_check_branch
      %1059 = sbr.rel (%p1057) target = $region40
    $region39: #{torch_model_forward.3} parent=5 // pred_region
      %s1060 = ssub.s32 %s9, 2
      // Predicated region
      $region41: #{torch_model_forward.3} parent=39 // pred_check
        %p1061 = pneg %p106
      $region42: #{torch_model_forward.3} parent=39 // pred_check_branch
        %1063 = sbr.rel (%p1061) target = $region44
      $region43: #{torch_model_forward.3} parent=39 // pred_region
        %s1064 = smul.u32 72, %s15
        %p1065 = scmp.lt.s32.totalorder %s1064, 143
        %s1066 = scalar_select %p1065, %s1064, 143
        %s1067 = smul.addr %s1066, 8
        %s1068 = scalar_lea.vmem %s3, %s1067
      $region44: #{torch_model_forward.3} parent=39 // pred_fallthru
        _
    $region40: #{torch_model_forward.3} parent=5 // pred_fallthru
      _
  $region6: #{torch_model_forward.3} parent=0 // loop_footer
    %s13 = sadd.s32 1, %s9
  $region7: #{torch_model_forward.3} parent=0 // loop_footer_branch
    %8 = sbr.rel target = $region3
  $region8: #{torch_model_forward.3} parent=0 // loop_exit
    _

// kernel: torch_model_forward.4
$region0: #{torch_model_forward.4}
  #allocation0 [shape = 'u32[]', space=smem, size = 0x4, offset = 0x4, fixed_abs, tag = 'smem constant byte address 0x4 - core index']
  #allocation1 [shape = 'u32[144,128]{1,0:T(1,128)}', space=vmem, size = 0x12000, scoped, tag = 'internal scratch']
  %s0 = inlined_call_operand.vmem [shape: f32[128,125], index: 0, kind: input, shape index: {}]
  %s1 = inlined_call_operand.vmem [shape: f32[125,128], index: 1, kind: input, shape index: {}]
  %s2 = inlined_call_operand.vmem [shape: f32[1,128], index: 2, kind: input, shape index: {}]
  %s3 = inlined_call_operand.vmem [shape: f32[128,128], index: 3, kind: output, shape index: {}]
  %s4 = sld [smem:[#allocation0]]
  $region45: #{torch_model_forward.4} parent=0
    _
  %s6 = ssub.s32 1, %s4
  %s7 = scalar_select 0, %s6, %s4
  loop: start=0, step=1, limit=4
  $region2: #{torch_model_forward.4} parent=0 // loop_pre_header
    _
  $region3: #{torch_model_forward.4} parent=0 // loop_header
    %s9 = sphi 0, %s13
    %p10 = scmp.ge.s32.totalorder %s9, 4
    %s19 = sphi 0, %s21
    %s22 = sphi 0, %s19
    %s23 = sphi 0, %s22
    %s39 = sphi 0, %s23
    %s43 = sphi 0, %s43
    %s45 = sphi 0, %s43
    %s46 = sphi 0, %s45
    %s60 = sphi 0, %s46
    %s64 = sphi 0, %s64
    %s66 = sphi 0, %s64
    %s67 = sphi 0, %s66
    %s81 = sphi 0, %s67
    %s87 = sphi 0, %s89
    %s90 = sphi 0, %s87
    %s91 = sphi 0, %s90
    %s107 = sphi 0, %s91
  $region4: #{torch_model_forward.4} parent=0 // loop_header_branch
    %12 = sbr.rel (%p10) target = $region8
  $region5: #{torch_model_forward.4} parent=0 // loop_body
    %s14 = ssub.s32 %s9, 1
    %s15 = ssub.s32 %s9, 2
    %s16 = sadd.s32 %s9, 1
    %s17 = ssub.s32 %s9, %s16
    %p18 = scmp.eq.s32.totalorder %s17, 0
    %s20 = sadd.s32 %s19, 1
    %s21 = scalar_select %p18, %s19, %s20
    %p24 = pneg %p18
    %p25 = scmp.eq.s32.totalorder %s9, 1
    %p26 = por %p24, %p25
    %p27 = scmp.ne.s32.totalorder %s19, %s22
    %p28 = scmp.eq.s32.totalorder %s9, 0
    %p29 = por %p27, %p28
    %p30 = scmp.ne.s32.totalorder %s19, %s22
    %p31 = scmp.eq.s32.totalorder %s14, 1
    %p32 = por %p30, %p31
    %p33 = scmp.ne.s32.totalorder %s22, %s23
    %p34 = scmp.eq.s32.totalorder %s14, 0
    %p35 = por %p33, %p34
    %p36 = scmp.ne.s32.totalorder %s22, %s23
    %p37 = scmp.eq.s32.totalorder %s15, 1
    %p38 = por %p36, %p37
    %p40 = scmp.ne.s32.totalorder %s23, %s39
    %p41 = scmp.eq.s32.totalorder %s15, 0
    %p42 = por %p40, %p41
    %s44 = sadd.s32 %s43, 1
    %p47 = scmp.eq.s32.totalorder %s9, 1
    %p48 = scmp.ne.s32.totalorder %s43, %s45
    %p49 = scmp.eq.s32.totalorder %s9, 0
    %p50 = por %p48, %p49
    %p51 = scmp.ne.s32.totalorder %s43, %s45
    %p52 = scmp.eq.s32.totalorder %s14, 1
    %p53 = por %p51, %p52
    %p54 = scmp.ne.s32.totalorder %s45, %s46
    %p55 = scmp.eq.s32.totalorder %s14, 0
    %p56 = por %p54, %p55
    %p57 = scmp.ne.s32.totalorder %s45, %s46
    %p58 = scmp.eq.s32.totalorder %s15, 1
    %p59 = por %p57, %p58
    %p61 = scmp.ne.s32.totalorder %s46, %s60
    %p62 = scmp.eq.s32.totalorder %s15, 0
    %p63 = por %p61, %p62
    %s65 = sadd.s32 %s64, 1
    %p68 = scmp.eq.s32.totalorder %s9, 1
    %p69 = scmp.ne.s32.totalorder %s64, %s66
    %p70 = scmp.eq.s32.totalorder %s9, 0
    %p71 = por %p69, %p70
    %p72 = scmp.ne.s32.totalorder %s64, %s66
    %p73 = scmp.eq.s32.totalorder %s14, 1
    %p74 = por %p72, %p73
    %p75 = scmp.ne.s32.totalorder %s66, %s67
    %p76 = scmp.eq.s32.totalorder %s14, 0
    %p77 = por %p75, %p76
    %p78 = scmp.ne.s32.totalorder %s66, %s67
    %p79 = scmp.eq.s32.totalorder %s15, 1
    %p80 = por %p78, %p79
    %p82 = scmp.ne.s32.totalorder %s67, %s81
    %p83 = scmp.eq.s32.totalorder %s15, 0
    %p84 = por %p82, %p83
    %s85 = ssub.s32 %s9, %s16
    %p86 = scmp.eq.s32.totalorder %s85, 0
    %s88 = sadd.s32 %s87, 1
    %s89 = scalar_select %p86, %s87, %s88
    %p92 = pneg %p86
    %p93 = scmp.eq.s32.totalorder %s9, 1
    %p94 = por %p92, %p93
    %p95 = scmp.ne.s32.totalorder %s87, %s90
    %p96 = scmp.eq.s32.totalorder %s9, 0
    %p97 = por %p95, %p96
    %p98 = scmp.ne.s32.totalorder %s87, %s90
    %p99 = scmp.eq.s32.totalorder %s14, 1
    %p100 = por %p98, %p99
    %p101 = scmp.ne.s32.totalorder %s90, %s91
    %p102 = scmp.eq.s32.totalorder %s14, 0
    %p103 = por %p101, %p102
    %p104 = scmp.ne.s32.totalorder %s90, %s91
    %p105 = scmp.eq.s32.totalorder %s15, 1
    %p106 = por %p104, %p105
    %p108 = scmp.ne.s32.totalorder %s91, %s107
    %p109 = scmp.eq.s32.totalorder %s15, 0
    %p110 = por %p108, %p109
    %p111 = scmp.le.s32.totalorder 1, %s9
    %p112 = scmp.lt.s32.totalorder %s9, 3
    %p113 = pnand %p111, %p112
    %p114 = pneg %p113
    // Predicated region
    $region9: #{torch_model_forward.4} parent=5 // pred_check
      _
    $region10: #{torch_model_forward.4} parent=5 // pred_check_branch
      %116 = sbr.rel (%p113) target = $region12
    $region11: #{torch_model_forward.4} parent=5 // pred_region
      %s117 = ssub.s32 %s9, 1
      // Predicated region
      $region13: #{torch_model_forward.4} parent=11 // pred_check
        %p118 = pneg %p56
      $region14: #{torch_model_forward.4} parent=11 // pred_check_branch
        %120 = sbr.rel (%p118) target = $region16
      $region15: #{torch_model_forward.4} parent=11 // pred_region
        _
      $region16: #{torch_model_forward.4} parent=11 // pred_fallthru
        _
      // Predicated region
      $region17: #{torch_model_forward.4} parent=11 // pred_check
        %p121 = pneg %p77
      $region18: #{torch_model_forward.4} parent=11 // pred_check_branch
        %123 = sbr.rel (%p121) target = $region20
      $region19: #{torch_model_forward.4} parent=11 // pred_region
        _
      $region20: #{torch_model_forward.4} parent=11 // pred_fallthru
        _
    $region12: #{torch_model_forward.4} parent=5 // pred_fallthru
      _
    %p124 = scmp.lt.s32.totalorder %s9, 2
    // Predicated region
    $region21: #{torch_model_forward.4} parent=5 // pred_check
      %p125 = pneg %p124
    $region22: #{torch_model_forward.4} parent=5 // pred_check_branch
      %127 = sbr.rel (%p125) target = $region24
    $region23: #{torch_model_forward.4} parent=5 // pred_region
      // Predicated region
      $region25: #{torch_model_forward.4} parent=23 // pred_check
        %p128 = pneg %p29
      $region26: #{torch_model_forward.4} parent=23 // pred_check_branch
        %130 = sbr.rel (%p128) target = $region28
      $region27: #{torch_model_forward.4} parent=23 // pred_region
        %s131 = smul.u32 8, %s9
        %p132 = scmp.lt.s32.totalorder %s131, 15
        %s133 = scalar_select %p132, %s131, 15
        %s134 = smul.addr %s133, 8
        %s135 = scalar_lea.vmem %s0, %s134
        %s136 = smul.u32 8, %s9
      $region28: #{torch_model_forward.4} parent=23 // pred_fallthru
        _
    $region24: #{torch_model_forward.4} parent=5 // pred_fallthru
      _
    %p137 = scmp.le.s32.totalorder 1, %s9
    %p138 = scmp.lt.s32.totalorder %s9, 3
    %p139 = pnand %p137, %p138
    %p140 = pneg %p139
    // Predicated region
    $region29: #{torch_model_forward.4} parent=5 // pred_check
      _
    $region30: #{torch_model_forward.4} parent=5 // pred_check_branch
      %142 = sbr.rel (%p139) target = $region32
    $region31: #{torch_model_forward.4} parent=5 // pred_region
      %s143 = ssub.s32 %s9, 1
      %s144 = smul.u32 8, %s14
      %p145 = scmp.lt.s32.totalorder %s144, 15
      %s146 = scalar_select %p145, %s144, 15
      %s147 = smul.addr %s146, 8
      %s148 = scalar_lea.vmem %s0, %s147
      %p149 = pneg %p35
      %p150 = pneg %p32
      %p151 = pneg %p56
      %p152 = pneg %p53
      %p153 = pneg %p77
      %p154 = pneg %p74
      %p155 = pneg %p103
      %p156 = pneg %p100
      %s157 = smul.u32 8, %s14
      %p158 = scmp.lt.s32.totalorder %s157, 15
      %s159 = scalar_select %p158, %s157, 15
      %s160 = smul.addr %s159, 8
      %s161 = scalar_lea.vmem %s3, %s160
      %s162 = smul.u32 8, %s14
      %p163 = scmp.lt.s32.totalorder %s162, 15
      %s164 = scalar_select %p163, %s162, 15
      %s165 = smul.addr %s164, 8
      %s166 = scalar_lea.vmem %s0, %s165
      %s167 = smul.u32 8, %s14
      %s168 = smul.u32 8, %s14
      %p169 = scmp.lt.s32.totalorder %s168, 15
      %s170 = scalar_select %p169, %s168, 15
      %s171 = smul.addr %s170, 8
      %s172 = scalar_lea.vmem %s3, %s171
      %s173 = smul.u32 8, %s14
      %v174 = vld [vmem:[%s166] sm:$0xff]
      %v175 = vld [vmem:[%s166 + $0x8] sm:$0xff]
      %v176 = vld [vmem:[%s166 + $0x10] sm:$0xff]
      %v177 = vld [vmem:[%s166 + $0x18] sm:$0xff]
      %v178 = vld [vmem:[%s166 + $0x20] sm:$0xff]
      %v179 = vld [vmem:[%s166 + $0x28] sm:$0xff]
      %v180 = vld [vmem:[%s166 + $0x30] sm:$0xff]
      %v181 = vld [vmem:[%s166 + $0x38] sm:$0xff]
      %v182 = vld [vmem:[%s1] sm:$0xff]
      %v183 = vld [vmem:[%s1 + $0x8] sm:$0xff]
      %v184 = vld [vmem:[%s1 + $0x10] sm:$0xff]
      %v185 = vld [vmem:[%s1 + $0x18] sm:$0xff]
      %v186 = vld [vmem:[%s1 + $0x20] sm:$0xff]
      %v187 = vld [vmem:[%s1 + $0x28] sm:$0xff]
      %v188 = vld [vmem:[%s1 + $0x30] sm:$0xff]
      %v189 = vld [vmem:[%s1 + $0x38] sm:$0xff]
      %v190 = vld [vmem:[%s1 + $0x40] sm:$0xff]
      %v191 = vld [vmem:[%s1 + $0x48] sm:$0xff]
      %v192 = vld [vmem:[%s1 + $0x50] sm:$0xff]
      %v193 = vld [vmem:[%s1 + $0x58] sm:$0xff]
      %v194 = vld [vmem:[%s1 + $0x60] sm:$0xff]
      %v195 = vld [vmem:[%s1 + $0x68] sm:$0xff]
      %v196 = vld [vmem:[%s1 + $0x70] sm:$0xff]
      %v197 = vld [vmem:[%s1 + $0x78] sm:$0x1f]
      %v198 = vld [vmem:[%s2] sm:$0x1]
      %v200 = vlaneseq
      %v201 = vshrl.u32 %v200, 7
      %v202 = vsub.s32 0, %v201
      %v203 = vrot.slane %v198, %v202
      %vm205 = vcmask 1022976
      %v207 = vsel %vm205, %v174, 0
      %v210 = vsel %vm205, %v175, 0
      %v213 = vsel %vm205, %v176, 0
      %v216 = vsel %vm205, %v177, 0
      %v219 = vsel %vm205, %v178, 0
      %v222 = vsel %vm205, %v179, 0
      %v225 = vsel %vm205, %v180, 0
      %v228 = vsel %vm205, %v181, 0
      %vm230 = vcmask 1044480
      %v232 = vsel %vm230, %v197, 0
      %234 = vmatprep.subr.mxu0 0.0
      %235 = vmatpush1.msra.mxu0 %v182
      %236 = vmatprep.subr.mxu0 0.0
      %237 = vmatpush1.msra.mxu0 %v183
      %238 = vmatprep.subr.mxu0 0.0
      %239 = vmatpush1.msra.mxu0 %v184
      %240 = vmatprep.subr.mxu0 0.0
      %241 = vmatpush1.msra.mxu0 %v185
      %242 = vmatprep.subr.mxu0 0.0
      %243 = vmatpush1.msra.mxu0 %v186
      %244 = vmatprep.subr.mxu0 0.0
      %245 = vmatpush1.msra.mxu0 %v187
      %246 = vmatprep.subr.mxu0 0.0
      %247 = vmatpush1.msra.mxu0 %v188
      %248 = vmatprep.subr.mxu0 0.0
      %249 = vmatpush1.msra.mxu0 %v189
      %250 = vmatprep.subr.mxu0 0.0
      %251 = vmatpush1.msra.mxu0 %v190
      %252 = vmatprep.subr.mxu0 0.0
      %253 = vmatpush1.msra.mxu0 %v191
      %254 = vmatprep.subr.mxu0 0.0
      %255 = vmatpush1.msra.mxu0 %v192
      %256 = vmatprep.subr.mxu0 0.0
      %257 = vmatpush1.msra.mxu0 %v193
      %258 = vmatprep.subr.mxu0 0.0
      %259 = vmatpush1.msra.mxu0 %v194
      %260 = vmatprep.subr.mxu0 0.0
      %261 = vmatpush1.msra.mxu0 %v195
      %262 = vmatprep.subr.mxu0 0.0
      %263 = vmatpush1.msra.mxu0 %v196
      %264 = vmatprep.subr.mxu0 0.0
      %265 = vmatpush1.msra.mxu0 %v232
      %266 = vmatprep.subr.mxu0 0.0
      %267 = vmatpush1.msra.mxu0 0.0
      %268 = vmatprep.subr.mxu0 0.0
      %269 = vmatpush1.msra.mxu0 0.0
      %270 = vmatprep.subr.mxu0 0.0
      %271 = vmatpush1.msra.mxu0 0.0
      %272 = vmatprep.subr.mxu0 0.0
      %273 = vmatpush1.msra.mxu0 0.0
      %274 = vmatprep.subr.mxu0 0.0
      %275 = vmatpush1.msra.mxu0 0.0
      %276 = vmatprep.subr.mxu0 0.0
      %277 = vmatpush1.msra.mxu0 0.0
      %278 = vmatprep.subr.mxu0 0.0
      %279 = vmatpush1.msra.mxu0 0.0
      %280 = vmatprep.subr.mxu0 0.0
      %281 = vmatpush1.msra.mxu0 0.0
      %282 = vmatprep.subr.mxu0 0.0
      %283 = vmatpush1.msra.mxu0 0.0
      %284 = vmatprep.subr.mxu0 0.0
      %285 = vmatpush1.msra.mxu0 0.0
      %286 = vmatprep.subr.mxu0 0.0
      %287 = vmatpush1.msra.mxu0 0.0
      %288 = vmatprep.subr.mxu0 0.0
      %289 = vmatpush1.msra.mxu0 0.0
      %290 = vmatprep.subr.mxu0 0.0
      %291 = vmatpush1.msra.mxu0 0.0
      %292 = vmatprep.subr.mxu0 0.0
      %293 = vmatpush1.msra.mxu0 0.0
      %294 = vmatprep.subr.mxu0 0.0
      %295 = vmatpush1.msra.mxu0 0.0
      %296 = vmatprep.subr.mxu0 0.0
      %297 = vmatpush1.msra.mxu0 0.0
      %298 = vmatprep.mubr.f32.mxu0 0.0
      %299 = vmatmul.mubr.f32.gmra.mrb[0].mxu0 %v207
      %v300 = vpop.f32.mrb[0].mxu0
      %v301 = vadd.f32 %v203, %v300
      %v302 = vpop.f32.mrb[0].mxu0
      %303 = vmatprep.mubr.f32.mxu0 0.0
      %304 = vmatmul.mubr.f32.gmra.mrb[0].mxu0 %v210
      %v305 = vpop.f32.mrb[0].mxu0
      %v306 = vadd.f32 %v203, %v305
      %v307 = vpop.f32.mrb[0].mxu0
      %308 = vmatprep.mubr.f32.mxu0 0.0
      %309 = vmatmul.mubr.f32.gmra.mrb[0].mxu0 %v213
      %v310 = vpop.f32.mrb[0].mxu0
      %v311 = vadd.f32 %v203, %v310
      %v312 = vpop.f32.mrb[0].mxu0
      %313 = vmatprep.mubr.f32.mxu0 0.0
      %314 = vmatmul.mubr.f32.gmra.mrb[0].mxu0 %v216
      %v315 = vpop.f32.mrb[0].mxu0
      %v316 = vadd.f32 %v203, %v315
      %v317 = vpop.f32.mrb[0].mxu0
      %318 = vmatprep.mubr.f32.mxu0 0.0
      %319 = vmatmul.mubr.f32.gmra.mrb[0].mxu0 %v219
      %v320 = vpop.f32.mrb[0].mxu0
      %v321 = vadd.f32 %v203, %v320
      %v322 = vpop.f32.mrb[0].mxu0
      %323 = vmatprep.mubr.f32.mxu0 0.0
      %324 = vmatmul.mubr.f32.gmra.mrb[0].mxu0 %v222
      %v325 = vpop.f32.mrb[0].mxu0
      %v326 = vadd.f32 %v203, %v325
      %v327 = vpop.f32.mrb[0].mxu0
      %328 = vmatprep.mubr.f32.mxu0 0.0
      %329 = vmatmul.mubr.f32.gmra.mrb[0].mxu0 %v225
      %v330 = vpop.f32.mrb[0].mxu0
      %v331 = vadd.f32 %v203, %v330
      %v332 = vpop.f32.mrb[0].mxu0
      %333 = vmatprep.mubr.f32.mxu0 0.0
      %334 = vmatmul.mubr.f32.gmra.mrb[0].mxu0 %v228
      %v335 = vpop.f32.mrb[0].mxu0
      %v336 = vadd.f32 %v203, %v335
      %v337 = vpop.f32.mrb[0].mxu0
      %338 = vdwg.mxu0
      %v339 = vmax.f32 %v301, 0.0
      %v340 = vmax.f32 %v306, 0.0
      %v341 = vmax.f32 %v311, 0.0
      %v342 = vmax.f32 %v316, 0.0
      %v343 = vmax.f32 %v321, 0.0
      %v344 = vmax.f32 %v326, 0.0
      %v345 = vmax.f32 %v331, 0.0
      %v346 = vmax.f32 %v336, 0.0
      %347 = vst [vmem:[%s172] sm:$0xff] %v339
      %348 = vst [vmem:[%s172 + $0x8] sm:$0xff] %v340
      %349 = vst [vmem:[%s172 + $0x10] sm:$0xff] %v341
      %350 = vst [vmem:[%s172 + $0x18] sm:$0xff] %v342
      %351 = vst [vmem:[%s172 + $0x20] sm:$0xff] %v343
      %352 = vst [vmem:[%s172 + $0x28] sm:$0xff] %v344
      %353 = vst [vmem:[%s172 + $0x30] sm:$0xff] %v345
      %354 = vst [vmem:[%s172 + $0x38] sm:$0xff] %v346
      %s355 = smul.u32 8, %s14
      %p356 = scmp.lt.s32.totalorder %s355, 15
      %s357 = scalar_select %p356, %s355, 15
      %s358 = smul.addr %s357, 8
      %s359 = scalar_lea.vmem %s3, %s358
      // Predicated region
      $region33: #{torch_model_forward.4} parent=31 // pred_check
        %p360 = pneg %p100
      $region34: #{torch_model_forward.4} parent=31 // pred_check_branch
        %362 = sbr.rel (%p360) target = $region36
      $region35: #{torch_model_forward.4} parent=31 // pred_region
        %s363 = smul.u32 8, %s14
      $region36: #{torch_model_forward.4} parent=31 // pred_fallthru
        _
    $region32: #{torch_model_forward.4} parent=5 // pred_fallthru
      _
    %p364 = scmp.le.s32.totalorder 2, %s9
    // Predicated region
    $region37: #{torch_model_forward.4} parent=5 // pred_check
      %p365 = pneg %p364
    $region38: #{torch_model_forward.4} parent=5 // pred_check_branch
      %367 = sbr.rel (%p365) target = $region40
    $region39: #{torch_model_forward.4} parent=5 // pred_region
      %s368 = ssub.s32 %s9, 2
      // Predicated region
      $region41: #{torch_model_forward.4} parent=39 // pred_check
        %p369 = pneg %p106
      $region42: #{torch_model_forward.4} parent=39 // pred_check_branch
        %371 = sbr.rel (%p369) target = $region44
      $region43: #{torch_model_forward.4} parent=39 // pred_region
        %s372 = smul.u32 8, %s15
        %p373 = scmp.lt.s32.totalorder %s372, 15
        %s374 = scalar_select %p373, %s372, 15
        %s375 = smul.addr %s374, 8
        %s376 = scalar_lea.vmem %s3, %s375
      $region44: #{torch_model_forward.4} parent=39 // pred_fallthru
        _
    $region40: #{torch_model_forward.4} parent=5 // pred_fallthru
      _
  $region6: #{torch_model_forward.4} parent=0 // loop_footer
    %s13 = sadd.s32 1, %s9
  $region7: #{torch_model_forward.4} parent=0 // loop_footer_branch
    %8 = sbr.rel target = $region3
  $region8: #{torch_model_forward.4} parent=0 // loop_exit
    _

// kernel: torch_model_forward.5
$region0: #{torch_model_forward.5}
  #allocation0 [shape = 'u32[]', space=smem, size = 0x4, offset = 0x4, fixed_abs, tag = 'smem constant byte address 0x4 - core index']
  #allocation1 [shape = 'u32[144,128]{1,0:T(1,128)}', space=vmem, size = 0x12000, scoped, tag = 'internal scratch']
  %s0 = inlined_call_operand.vmem [shape: f32[2,160], index: 0, kind: input, shape index: {}]
  %s1 = inlined_call_operand.vmem [shape: f32[160,100], index: 1, kind: input, shape index: {}]
  %s2 = inlined_call_operand.vmem [shape: f32[1,100], index: 2, kind: input, shape index: {}]
  %s3 = inlined_call_operand.vmem [shape: f32[100,128], index: 3, kind: input, shape index: {}]
  %s4 = inlined_call_operand.vmem [shape: f32[1,128], index: 4, kind: input, shape index: {}]
  %s5 = inlined_call_operand.hbm [shape: f32[2,128], index: 5, kind: output, shape index: {}]
  %s6 = sld [smem:[#allocation0]]
  $region30: #{torch_model_forward.5} parent=0
    _
  %s8 = ssub.s32 1, %s6
  %s9 = scalar_select 0, %s8, %s6
  $region1: #{torch_model_forward.5} parent=0
    #allocation2 [shape = 'u8[1024]{0}', space=vmem, size = 0x400, scoped, tag = 'output window, operand 0, single buffered']
    #allocation3 [shape = 's32[1]{0}', space=sflag, size = 0x4, scoped, tag = 'scoped memory for torch_model_forward.5']
    %10 = vsyncpa [#allocation3], 0
    // Predicated region
    $region2: #{torch_model_forward.5} parent=1 // pred_check
      _
    $region3: #{torch_model_forward.5} parent=1 // pred_check_branch
      %12 = sbr.rel (0) target = $region5
    $region4: #{torch_model_forward.5} parent=1 // pred_region
      _
    $region5: #{torch_model_forward.5} parent=1 // pred_fallthru
      _
    // Predicated region
    $region6: #{torch_model_forward.5} parent=1 // pred_check
      _
    $region7: #{torch_model_forward.5} parent=1 // pred_check_branch
      %14 = sbr.rel (0) target = $region9
    $region8: #{torch_model_forward.5} parent=1 // pred_region
      _
    $region9: #{torch_model_forward.5} parent=1 // pred_fallthru
      _
    // Predicated region
    $region10: #{torch_model_forward.5} parent=1 // pred_check
      _
    $region11: #{torch_model_forward.5} parent=1 // pred_check_branch
      %16 = sbr.rel (0) target = $region13
    $region12: #{torch_model_forward.5} parent=1 // pred_region
      _
    $region13: #{torch_model_forward.5} parent=1 // pred_fallthru
      _
    // Predicated region
    $region14: #{torch_model_forward.5} parent=1 // pred_check
      _
    $region15: #{torch_model_forward.5} parent=1 // pred_check_branch
      %18 = sbr.rel (0) target = $region17
    $region16: #{torch_model_forward.5} parent=1 // pred_region
      _
    $region17: #{torch_model_forward.5} parent=1 // pred_fallthru
      _
    // Predicated region
    $region18: #{torch_model_forward.5} parent=1 // pred_check
      _
    $region19: #{torch_model_forward.5} parent=1 // pred_check_branch
      %20 = sbr.rel (0) target = $region21
    $region20: #{torch_model_forward.5} parent=1 // pred_region
      _
    $region21: #{torch_model_forward.5} parent=1 // pred_fallthru
      _
    %v21 = vld [vmem:[%s0] sm:$0xf]
    %v22 = vld [vmem:[%s1] sm:$0xff]
    %v23 = vld [vmem:[%s1 + $0x8] sm:$0xff]
    %v24 = vld [vmem:[%s1 + $0x10] sm:$0xff]
    %v25 = vld [vmem:[%s1 + $0x18] sm:$0xff]
    %v26 = vld [vmem:[%s1 + $0x20] sm:$0xff]
    %v27 = vld [vmem:[%s1 + $0x28] sm:$0xff]
    %v28 = vld [vmem:[%s1 + $0x30] sm:$0xff]
    %v29 = vld [vmem:[%s1 + $0x38] sm:$0xff]
    %v30 = vld [vmem:[%s1 + $0x40] sm:$0xff]
    %v31 = vld [vmem:[%s1 + $0x48] sm:$0xff]
    %v32 = vld [vmem:[%s1 + $0x50] sm:$0xff]
    %v33 = vld [vmem:[%s1 + $0x58] sm:$0xff]
    %v34 = vld [vmem:[%s1 + $0x60] sm:$0xff]
    %v35 = vld [vmem:[%s1 + $0x68] sm:$0xff]
    %v36 = vld [vmem:[%s1 + $0x70] sm:$0xff]
    %v37 = vld [vmem:[%s1 + $0x78] sm:$0xff]
    %v38 = vld [vmem:[%s1 + $0x80] sm:$0xff]
    %v39 = vld [vmem:[%s1 + $0x88] sm:$0xff]
    %v40 = vld [vmem:[%s1 + $0x90] sm:$0xff]
    %v41 = vld [vmem:[%s1 + $0x98] sm:$0xff]
    %v42 = vld [vmem:[%s2] sm:$0x1]
    %v44 = vlaneseq
    %v45 = vshrl.u32 %v44, 7
    %v46 = vsub.s32 0, %v45
    %v47 = vrot.slane %v42, %v46
    %v51 = vunpack.c.l.s4 1983009808
    %v52 = vunpack.c.0.s8 %v51
    %v53 = vlaneseq
    %v54 = vshrl.u32 %v53, 7
    %v55 = vsub.s32 %v52, %v54
    %v56 = vrot.slane %v21, %v55
    %v57 = vcombine.high %v56, %v56
    %vm59 = vcmask 261120
    %v60 = vsel %vm59, %v57, 0
    %62 = vmatprep.subr.mxu0 0.0
    %63 = vmatpush1.msra.mxu0 %v22
    %64 = vmatprep.subr.mxu0 0.0
    %65 = vmatpush1.msra.mxu0 %v23
    %66 = vmatprep.subr.mxu0 0.0
    %67 = vmatpush1.msra.mxu0 %v24
    %68 = vmatprep.subr.mxu0 0.0
    %69 = vmatpush1.msra.mxu0 %v25
    %70 = vmatprep.subr.mxu0 0.0
    %71 = vmatpush1.msra.mxu0 %v26
    %72 = vmatprep.subr.mxu0 0.0
    %73 = vmatpush1.msra.mxu0 %v27
    %74 = vmatprep.subr.mxu0 0.0
    %75 = vmatpush1.msra.mxu0 %v28
    %76 = vmatprep.subr.mxu0 0.0
    %77 = vmatpush1.msra.mxu0 %v29
    %78 = vmatprep.subr.mxu0 0.0
    %79 = vmatpush1.msra.mxu0 %v30
    %80 = vmatprep.subr.mxu0 0.0
    %81 = vmatpush1.msra.mxu0 %v31
    %82 = vmatprep.subr.mxu0 0.0
    %83 = vmatpush1.msra.mxu0 %v32
    %84 = vmatprep.subr.mxu0 0.0
    %85 = vmatpush1.msra.mxu0 %v33
    %86 = vmatprep.subr.mxu0 0.0
    %87 = vmatpush1.msra.mxu0 %v34
    %88 = vmatprep.subr.mxu0 0.0
    %89 = vmatpush1.msra.mxu0 %v35
    %90 = vmatprep.subr.mxu0 0.0
    %91 = vmatpush1.msra.mxu0 %v36
    %92 = vmatprep.subr.mxu0 0.0
    %93 = vmatpush1.msra.mxu0 %v37
    %94 = vmatprep.subr.mxu0 0.0
    %95 = vmatpush1.msra.mxu0 %v38
    %96 = vmatprep.subr.mxu0 0.0
    %97 = vmatpush1.msra.mxu0 %v39
    %98 = vmatprep.subr.mxu0 0.0
    %99 = vmatpush1.msra.mxu0 %v40
    %100 = vmatprep.subr.mxu0 0.0
    %101 = vmatpush1.msra.mxu0 %v41
    %102 = vmatprep.subr.mxu0 0.0
    %103 = vmatpush1.msra.mxu0 0.0
    %104 = vmatprep.subr.mxu0 0.0
    %105 = vmatpush1.msra.mxu0 0.0
    %106 = vmatprep.subr.mxu0 0.0
    %107 = vmatpush1.msra.mxu0 0.0
    %108 = vmatprep.subr.mxu0 0.0
    %109 = vmatpush1.msra.mxu0 0.0
    %110 = vmatprep.subr.mxu0 0.0
    %111 = vmatpush1.msra.mxu0 0.0
    %112 = vmatprep.subr.mxu0 0.0
    %113 = vmatpush1.msra.mxu0 0.0
    %114 = vmatprep.subr.mxu0 0.0
    %115 = vmatpush1.msra.mxu0 0.0
    %116 = vmatprep.subr.mxu0 0.0
    %117 = vmatpush1.msra.mxu0 0.0
    %118 = vmatprep.subr.mxu0 0.0
    %119 = vmatpush1.msra.mxu0 0.0
    %120 = vmatprep.subr.mxu0 0.0
    %121 = vmatpush1.msra.mxu0 0.0
    %122 = vmatprep.subr.mxu0 0.0
    %123 = vmatpush1.msra.mxu0 0.0
    %124 = vmatprep.subr.mxu0 0.0
    %125 = vmatpush1.msra.mxu0 0.0
    %126 = vmatprep.mubr.f32.mxu0 %v60
    %127 = vmatmul.mubr.f32.gmra.mrb[0].mxu0 %v56
    %v128 = vpop.f32.mrb[0].mxu0
    %v129 = vadd.f32 %v47, %v128
    %v130 = vpop.f32.mrb[0].mxu0
    %131 = vdwg.mxu0
    %v132 = vmax.f32 %v129, 0.0
    %v133 = vld [vmem:[%s3] sm:$0xff]
    %v134 = vld [vmem:[%s3 + $0x8] sm:$0xff]
    %v135 = vld [vmem:[%s3 + $0x10] sm:$0xff]
    %v136 = vld [vmem:[%s3 + $0x18] sm:$0xff]
    %v137 = vld [vmem:[%s3 + $0x20] sm:$0xff]
    %v138 = vld [vmem:[%s3 + $0x28] sm:$0xff]
    %v139 = vld [vmem:[%s3 + $0x30] sm:$0xff]
    %v140 = vld [vmem:[%s3 + $0x38] sm:$0xff]
    %v141 = vld [vmem:[%s3 + $0x40] sm:$0xff]
    %v142 = vld [vmem:[%s3 + $0x48] sm:$0xff]
    %v143 = vld [vmem:[%s3 + $0x50] sm:$0xff]
    %v144 = vld [vmem:[%s3 + $0x58] sm:$0xff]
    %v145 = vld [vmem:[%s3 + $0x60] sm:$0xf]
    %v146 = vld [vmem:[%s4] sm:$0x1]
    %v148 = vlaneseq
    %v149 = vshrl.u32 %v148, 7
    %v150 = vsub.s32 0, %v149
    %v151 = vrot.slane %v146, %v150
    %vm153 = vcmask 818176
    %v155 = vsel %vm153, %v132, 0
    %vm157 = vcmask 1043456
    %v159 = vsel %vm157, %v145, 0
    %161 = vmatprep.subr.mxu0 0.0
    %162 = vmatpush1.msra.mxu0 %v133
    %163 = vmatprep.subr.mxu0 0.0
    %164 = vmatpush1.msra.mxu0 %v134
    %165 = vmatprep.subr.mxu0 0.0
    %166 = vmatpush1.msra.mxu0 %v135
    %167 = vmatprep.subr.mxu0 0.0
    %168 = vmatpush1.msra.mxu0 %v136
    %169 = vmatprep.subr.mxu0 0.0
    %170 = vmatpush1.msra.mxu0 %v137
    %171 = vmatprep.subr.mxu0 0.0
    %172 = vmatpush1.msra.mxu0 %v138
    %173 = vmatprep.subr.mxu0 0.0
    %174 = vmatpush1.msra.mxu0 %v139
    %175 = vmatprep.subr.mxu0 0.0
    %176 = vmatpush1.msra.mxu0 %v140
    %177 = vmatprep.subr.mxu0 0.0
    %178 = vmatpush1.msra.mxu0 %v141
    %179 = vmatprep.subr.mxu0 0.0
    %180 = vmatpush1.msra.mxu0 %v142
    %181 = vmatprep.subr.mxu0 0.0
    %182 = vmatpush1.msra.mxu0 %v143
    %183 = vmatprep.subr.mxu0 0.0
    %184 = vmatpush1.msra.mxu0 %v144
    %185 = vmatprep.subr.mxu0 0.0
    %186 = vmatpush1.msra.mxu0 %v159
    %187 = vmatprep.subr.mxu0 0.0
    %188 = vmatpush1.msra.mxu0 0.0
    %189 = vmatprep.subr.mxu0 0.0
    %190 = vmatpush1.msra.mxu0 0.0
    %191 = vmatprep.subr.mxu0 0.0
    %192 = vmatpush1.msra.mxu0 0.0
    %193 = vmatprep.subr.mxu0 0.0
    %194 = vmatpush1.msra.mxu0 0.0
    %195 = vmatprep.subr.mxu0 0.0
    %196 = vmatpush1.msra.mxu0 0.0
    %197 = vmatprep.subr.mxu0 0.0
    %198 = vmatpush1.msra.mxu0 0.0
    %199 = vmatprep.subr.mxu0 0.0
    %200 = vmatpush1.msra.mxu0 0.0
    %201 = vmatprep.subr.mxu0 0.0
    %202 = vmatpush1.msra.mxu0 0.0
    %203 = vmatprep.subr.mxu0 0.0
    %204 = vmatpush1.msra.mxu0 0.0
    %205 = vmatprep.subr.mxu0 0.0
    %206 = vmatpush1.msra.mxu0 0.0
    %207 = vmatprep.subr.mxu0 0.0
    %208 = vmatpush1.msra.mxu0 0.0
    %209 = vmatprep.subr.mxu0 0.0
    %210 = vmatpush1.msra.mxu0 0.0
    %211 = vmatprep.subr.mxu0 0.0
    %212 = vmatpush1.msra.mxu0 0.0
    %213 = vmatprep.subr.mxu0 0.0
    %214 = vmatpush1.msra.mxu0 0.0
    %215 = vmatprep.subr.mxu0 0.0
    %216 = vmatpush1.msra.mxu0 0.0
    %217 = vmatprep.subr.mxu0 0.0
    %218 = vmatpush1.msra.mxu0 0.0
    %219 = vmatprep.subr.mxu0 0.0
    %220 = vmatpush1.msra.mxu0 0.0
    %221 = vmatprep.subr.mxu0 0.0
    %222 = vmatpush1.msra.mxu0 0.0
    %223 = vmatprep.subr.mxu0 0.0
    %224 = vmatpush1.msra.mxu0 0.0
    %225 = vmatprep.mubr.f32.mxu0 0.0
    %226 = vmatmul.mubr.f32.gmra.mrb[0].mxu0 %v155
    %v227 = vpop.f32.mrb[0].mxu0
    %v228 = vadd.f32 %v151, %v227
    %v229 = vpop.f32.mrb[0].mxu0
    %230 = vdwg.mxu0
    %v231 = vlaneseq
    %v232 = vand.u32 %v231, 127
    %vm233 = vcmp.lt.s32.totalorder %v232, 10
    %v234 = vsel %vm233, %v228, -1e+30
    %vm235 = vcmask 1041408
    %v236 = vsel %vm235, %v234, -inf
    %237 = vmax.xlane.f32.xlu0 %v236
    %v238 = vpop.xlane.xlu0 %237
    %v239 = vsub.f32 %v234, %v238
    %v240 = vmul.f32 %v239, 1.442695
    %v241 = vpow.pop %v240
    %v242 = vsel %vm235, %v241, 0.0
    %243 = vadd.xlane.f32.xlu0 %v242
    %v244 = vpop.xlane.xlu0 %243
    %v245 = vlog2.pop %v244
    %v246 = vmul.f32 %v245, 0.6931472
    %v247 = vadd.f32 %v238, %v246
    %v248 = vsub.f32 %v234, %v247
    %249 = vst [vmem:[#allocation2] sm:$0x3] %v248
    // Predicated region
    $region22: #{torch_model_forward.5} parent=1 // pred_check
      _
    $region23: #{torch_model_forward.5} parent=1 // pred_check_branch
      %251 = sbr.rel (0) target = $region25
    $region24: #{torch_model_forward.5} parent=1 // pred_region
      %s253 = ssub.s32 32, 32
      %254 = vsyncadd [#allocation3], %s253
      %s256 = sshll.u32 [#allocation2], 4
      %s257 = int_to_ptr.vmem [resolvable:$true] %s256
      %259 = dma.vmem_to_hbm [thread:$0]  %s257, 32, %s5, [#allocation3]
    $region25: #{torch_model_forward.5} parent=1 // pred_fallthru
      _
    // Predicated region
    $region26: #{torch_model_forward.5} parent=1 // pred_check
      _
    $region27: #{torch_model_forward.5} parent=1 // pred_check_branch
      %261 = sbr.rel (0) target = $region29
    $region28: #{torch_model_forward.5} parent=1 // pred_region
      %262 = dma.done [#allocation3], 32
    $region29: #{torch_model_forward.5} parent=1 // pred_fallthru
      _
    %263 = vsyncpa [#allocation3], 1

</llo_original>
